<compile_context>
chip_gen: v5e
topology: v5e:2x2
jax: 0.10.0
libtpu: 0.0.40
codegen_flags: <defaults>
</compile_context>

<pallas_src>
import functools

import jax
import jax.numpy as jnp
import numpy as np
from jax.experimental import pallas as pl
from jax.experimental.pallas import tpu as pltpu

NUM_TAPS = 27        # 3 dilation rates * 9 kernel taps
NUM_TAPS_PAD = 32    # padded to a friendly lane width


def _cdiv(a, b):
    return (a + b - 1) // b


@functools.lru_cache(maxsize=1)
def _vmem_limit_bytes():
    """Per-generation scoped-VMEM budget: ~3/4 of physical VMEM, capped at 100 MiB.
    v7x (64 MiB physical) -> 48 MiB; v5e/v6e (128 MiB) -> 96 MiB.  Falls back to the
    v7x-safe value if the hardware query is unavailable."""
    cap = 64 * 1024 * 1024
    try:
        cap = int(pltpu.get_tpu_info().vmem_capacity_bytes)
    except Exception:
        pass
    return min((cap * 3) // 4, 100 * 1024 * 1024)


def _choose_cin_tile(Cin):
    """Split Cin only when it is large: shrinks the per-block VMEM footprint (lets the HW tile
    grow) and adds a second 'parallel' grid axis so both v7x TensorCores get work at small B."""
    if Cin <= 128 or Cin % 8:
        return Cin
    for t in (256, 128, 64, 32, 16, 8):
        if Cin % t == 0:
            return t
    return Cin


def _choose_hw_tile(HW, tile_c, budget_bytes):
    """Largest HW tile whose double-buffered x block (2 * tile_c * t * 4B) fits `budget_bytes`,
    preferring (a) one full-HW block, then (b) a 128-multiple divisor of HW (no padding), then
    (c) a power-of-two tile (rare fallback, requires padding the last tile)."""
    if 2 * tile_c * HW * 4 <= budget_bytes:
        return HW
    for t in (4096, 2048, 1024, 512, 256, 128):
        if t < HW and HW % t == 0 and 2 * tile_c * t * 4 <= budget_bytes:
            return t
    t = 128
    while 2 * t <= 4096 and 2 * tile_c * (2 * t) * 4 <= budget_bytes:
        t *= 2
    return t


def _choose_tail_ktile(Kdim, Cmid, vmem_limit):
    """Tile the 9*Cin contraction of the tail so the double-buffered wdil block stays <= ~8 MiB
    (it is ~27 MiB untiled at hidden_channel=1024); everything else in the tail is tiny."""
    budget = min(8 * 1024 * 1024, vmem_limit // 4)
    if 2 * 3 * Kdim * Cmid * 4 <= budget or Kdim % 128:
        return Kdim
    for t in (2048, 1024, 512, 256, 128):
        if Kdim % t == 0 and 2 * 3 * t * Cmid * 4 <= budget:
            return t
    return Kdim


# --------------------------------------------------------------------------- kernel 1: reduction
def gap_reduce_kernel(x_ref, mt_ref, out_ref, *, tile_hw, nk):
    """out[(cin, tap)] += x_tile (tile_c, tile_hw) @ tap_mask_slice (tile_hw, 32).

    The output block index is constant over the reduction axis, so out_ref is VMEM-resident and
    used directly as the accumulator (init at k == 0).  The mask is a single resident block; the
    current HW window is cut out with an aligned dynamic slice."""
    k = pl.program_id(2)

    @pl.when(k == 0)
    def _():
        out_ref[...] = jnp.zeros_like(out_ref)

    if nk == 1:
        m = mt_ref[...]
    else:
        start = pl.multiple_of(k * tile_hw, tile_hw)
        m = mt_ref[pl.ds(start, tile_hw), :]

    out_ref[0, :, :] += jnp.dot(x_ref[0], m, preferred_element_type=jnp.float32)


def _build_tap_mask(H, W, dilation_rates, hw_pad):
    """Static (hw_pad, 32) 0/1 mask; column r*9 + kh*3 + kw is the spatial support of that conv
    tap (zero padding => partial row/col ranges for kh/kw != 1).  Rows >= H*W are zero."""
    def axis_masks(n, rate):
        idx = np.arange(n)
        return np.stack([idx < (n - rate), np.ones((n,), bool), idx >= rate], axis=0)  # (3, n)

    slabs = []
    for rate in dilation_rates:
        rm = axis_masks(H, rate)                               # (3, H)  -> kh
        cm = axis_masks(W, rate)                               # (3, W)  -> kw
        m = rm[:, None, :, None] & cm[None, :, None, :]        # (3, 3, H, W)
        slabs.append(m.reshape(9, H * W))
    mask = np.concatenate(slabs, axis=0).astype(np.float32)    # (27, H*W)
    mt = np.zeros((hw_pad, NUM_TAPS_PAD), np.float32)
    mt[: H * W, :NUM_TAPS] = mask.T
    return jnp.asarray(mt)


def multi_atrous_tap_means(x, dilation_rates, force_hw_tile=None):
    """x: (B, Cin, H, W) NCHW -> (3, B, 9*Cin) per-rate tap means in torch flatten order
    (row index cin*9 + kh*3 + kw, matching torch_weight.reshape(Cmid, Cin*9).T)."""
    assert len(dilation_rates) == 3
    B, Cin, H, W = x.shape
    HW = H * W

    vmem_limit = _vmem_limit_bytes()
    tile_c = _choose_cin_tile(Cin)
    nc = Cin // tile_c

    # Reserve VMEM for the resident mask, the output block (both conservatively x2 for
    # double-buffering) plus slack; the rest is the x-block budget.
    reserve = 2 * HW * NUM_TAPS_PAD * 4 + 2 * tile_c * NUM_TAPS_PAD * 4 + 2 * 1024 * 1024
    budget_x = max(vmem_limit - reserve, 2 * tile_c * 128 * 4)
    tile_hw = force_hw_tile if force_hw_tile is not None else _choose_hw_tile(HW, tile_c, budget_x)

    nk = _cdiv(HW, tile_hw)
    hw_pad = nk * tile_hw

    xf = x.reshape(B, Cin, HW)                                 # contiguous reshape: free
    if hw_pad != HW:
        # Rare fallback (HW neither fits one block nor divides by 128): explicit zero-fill of
        # the tail so no OOB garbage (NaN/Inf) can leak past the zero mask rows.
        xf = jnp.pad(xf, ((0, 0), (0, 0), (0, hw_pad - HW)))
    mt = _build_tap_mask(H, W, dilation_rates, hw_pad)

    kernel = functools.partial(gap_reduce_kernel, tile_hw=tile_hw, nk=nk)

    tap_sums = pl.pallas_call(
        kernel,
        out_shape=jax.ShapeDtypeStruct((B, Cin, NUM_TAPS_PAD), jnp.float32),
        grid_spec=pltpu.PrefetchScalarGridSpec(
            num_scalar_prefetch=0,
            grid=(B, nc, nk),
            in_specs=[
                pl.BlockSpec((1, tile_c, tile_hw), lambda b, c, k: (b, c, k)),
                # full-array mask block, constant index_map -> fetched once, stays resident
                pl.BlockSpec((hw_pad, NUM_TAPS_PAD), lambda b, c, k: (0, 0)),
            ],
            out_specs=pl.BlockSpec((1, tile_c, NUM_TAPS_PAD), lambda b, c, k: (b, c, 0)),
        ),
        compiler_params=pltpu.CompilerParams(
            dimension_semantics=("parallel", "parallel", "arbitrary"),
            vmem_limit_bytes=vmem_limit,
        ),
        cost_estimate=pl.CostEstimate(
            flops=2 * B * Cin * hw_pad * NUM_TAPS_PAD,
            transcendentals=0,
            bytes_accessed=4 * (B * Cin * hw_pad + hw_pad * NUM_TAPS_PAD
                                + B * Cin * NUM_TAPS_PAD),
        ),
    )(xf, mt)

    inv_hw = 1.0 / float(HW)
    taps = tap_sums[:, :, :NUM_TAPS] * inv_hw                                 # (B, Cin, 27) means
    # split per rate and flatten to torch order (cin*9 + kh*3 + kw); tiny XLA glue.
    taps3 = taps.reshape(B, Cin, 3, 9).transpose(2, 0, 1, 3).reshape(3, B, Cin * 9)
    return taps3


# --------------------------------------------------------------------------- kernel 2: tail
def tail_kernel(taps_ref, wdil_ref, bdil_ref, wgap_ref, bgap_ref,
                w1_ref, b1_ref, w2_ref, gamma_ref, beta_ref, w3_ref, b3_ref,
                out_ref, pooled_ref):
    f32 = jnp.float32
    k = pl.program_id(0)

    @pl.when(k == 0)
    def _():
        pooled_ref[...] = jnp.zeros_like(pooled_ref)

    # MultiAtrous dilated conv + GAP, reduced to a (B, Kt) @ (Kt, Cmid) contraction per rate,
    # accumulated across the K tiles of the 9*Cin axis.
    for r in range(3):
        pooled_ref[r] += jnp.dot(taps_ref[r], wdil_ref[r], preferred_element_type=f32)

    @pl.when(k == pl.num_programs(0) - 1)
    def _():
        # shared GAP-branch 1x1 conv + ReLU per rate, then channel concat
        gs = []
        for r in range(3):
            pooled = pooled_ref[r] + bdil_ref[r:r + 1, :]                     # (B, Cmid)
            g = jnp.dot(pooled, wgap_ref[...], preferred_element_type=f32) + bgap_ref[...]
            gs.append(jnp.maximum(g, 0.0))                                    # (B, Cg)
        lf = jnp.concatenate(gs, axis=-1)                                     # (B, 3*Cg)

        # conv1x1_1 + ReLU ; conv1x1_2 (bias=False)
        t1 = jnp.maximum(jnp.dot(lf, w1_ref[...], preferred_element_type=f32) + b1_ref[...], 0.0)
        t2 = jnp.dot(t1, w2_ref[...], preferred_element_type=f32)             # (B, Cout)

        # BatchNorm2d, training-mode batch stats (biased var, eps=1e-5).  All S*S spatial
        # positions within a batch are identical (bilinear upsample of a 1x1 map), so stats over
        # the B rows are exactly the stats over (N, H, W).
        mean = jnp.mean(t2, axis=0, keepdims=True)
        var = jnp.mean((t2 - mean) ** 2, axis=0, keepdims=True)
        bn = (t2 - mean) * jax.lax.rsqrt(var + 1e-5) * gamma_ref[...] + beta_ref[...]

        # attention: ReLU -> conv1x1_3 -> Softplus(beta=1, threshold=20)
        att = jnp.dot(jnp.maximum(bn, 0.0), w3_ref[...], preferred_element_type=f32) + b3_ref[...]
        att = jnp.where(att > 20.0, att, jnp.log1p(jnp.exp(jnp.minimum(att, 20.0))))

        # F.normalize(p=2, dim=channel, eps=1e-12) then gate by attention (rsqrt on EUP slot)
        inv_nrm = jax.lax.rsqrt(jnp.maximum(jnp.sum(bn * bn, axis=-1, keepdims=True), 1e-24))
        vec = bn * inv_nrm * att                                              # (B, Cout)

        # Broadcast to all spatial positions directly in NC(HW) layout: lane-dense for
        # production S*S (>=128) and no external transpose afterwards.
        out_ref[...] = jnp.broadcast_to(vec[:, :, None], out_ref.shape)       # (B, Cout, S*S)


# --------------------------------------------------------------------------- wrapper
def dolg_local_branch(x, params, img_size, dilation_rates=(6, 12, 18)):
    """x: (B, Cin, H, W) NCHW float32 -> (B, Cout, S, S) NCHW, S = img_size // 32."""
    B, Cin, H, W = x.shape
    S = img_size // 32
    SS = S * S
    Cmid = params["wdil"].shape[2]
    Cg = params["wgap"].shape[1]
    C3g = params["w1"].shape[0]
    Cout = params["w1"].shape[1]

    taps3 = multi_atrous_tap_means(x, dilation_rates)                         # (3, B, 9*Cin)

    vmem_limit = _vmem_limit_bytes()
    Kdim = 9 * Cin
    tile_kt = _choose_tail_ktile(Kdim, Cmid, vmem_limit)
    nkt = Kdim // tile_kt

    const2 = lambda k: (0, 0)
    out_bcs = pl.pallas_call(
        tail_kernel,
        out_shape=jax.ShapeDtypeStruct((B, Cout, SS), jnp.float32),
        grid_spec=pltpu.PrefetchScalarGridSpec(
            num_scalar_prefetch=0,
            grid=(nkt,),
            in_specs=[
                pl.BlockSpec((3, B, tile_kt), lambda k: (0, 0, k)),           # taps
                pl.BlockSpec((3, tile_kt, Cmid), lambda k: (0, k, 0)),        # wdil (K-tiled)
                pl.BlockSpec((3, Cmid), const2),                              # bdil
                pl.BlockSpec((Cmid, Cg), const2),                             # wgap
                pl.BlockSpec((1, Cg), const2),                                # bgap
                pl.BlockSpec((C3g, Cout), const2),                            # w1
                pl.BlockSpec((1, Cout), const2),                              # b1
                pl.BlockSpec((Cout, Cout), const2),                           # w2
                pl.BlockSpec((1, Cout), const2),                              # gamma
                pl.BlockSpec((1, Cout), const2),                              # beta
                pl.BlockSpec((Cout, Cout), const2),                           # w3
                pl.BlockSpec((1, Cout), const2),                              # b3
            ],
            out_specs=pl.BlockSpec((B, Cout, SS), lambda k: (0, 0, 0)),
            scratch_shapes=[pltpu.VMEM((3, B, Cmid), jnp.float32)],
        ),
        compiler_params=pltpu.CompilerParams(
            dimension_semantics=("arbitrary",),
            vmem_limit_bytes=vmem_limit,
        ),
    )(
        taps3,
        params["wdil"], params["bdil"],
        params["wgap"], params["bgap"],
        params["w1"], params["b1"],
        params["w2"],
        params["gamma"], params["beta"],
        params["w3"], params["b3"],
    )
    # TODO(synk): for very large B*Cout*SS, additionally tile the broadcast store over SS/B so
    # the output block stays well under v7x's 64 MiB VMEM.
    return out_bcs.reshape(B, Cout, S, S)                                     # free reshape, NCHW


def init_params(key, in_channel, out_channel, hidden_channel):
    cmid = hidden_channel // 4
    cg = hidden_channel // 2
    ks = jax.random.split(key, 9)

    def n(k, shape, scale=0.1):
        return (scale * jax.random.normal(k, shape)).astype(jnp.float32)

    return dict(
        # wdil[r] corresponds to torch conv weight (Cmid, Cin, 3, 3).reshape(Cmid, Cin*9).T
        wdil=n(ks[0], (3, 9 * in_channel, cmid)),
        bdil=n(ks[1], (3, cmid)),
        wgap=n(ks[2], (cmid, cg)),
        bgap=n(ks[3], (1, cg)),
        w1=n(ks[4], (3 * cg, out_channel)),
        b1=n(ks[5], (1, out_channel)),
        w2=n(ks[6], (out_channel, out_channel)),
        gamma=jnp.ones((1, out_channel), jnp.float32),
        beta=jnp.zeros((1, out_channel), jnp.float32),
        w3=n(ks[7], (out_channel, out_channel)),
        b3=n(ks[8], (1, out_channel)),
    )


# --------------------------------------------------------------------------- pure-JAX references
def reference_tap_means(x, dilation_rates):
    B, Cin, H, W = x.shape
    outs = []
    for rate in dilation_rates:
        xp = jnp.pad(x, ((0, 0), (0, 0), (rate, rate), (rate, rate)))
        taps = []
        for kh in range(3):
            for kw in range(3):
                win = xp[:, :, kh * rate:kh * rate + H, kw * rate:kw * rate + W]
                taps.append(jnp.mean(win, axis=(2, 3)))                       # (B, Cin)
        t = jnp.stack(taps, axis=-1)                                          # (B, Cin, 9)
        outs.append(t.reshape(B, Cin * 9))
    return jnp.stack(outs, axis=0)                                            # (3, B, 9*Cin)


def dolg_local_branch_reference(x, params, img_size, dilation_rates=(6, 12, 18)):
    B, Cin, H, W = x.shape
    S = img_size // 32
    Cmid = params["wdil"].shape[2]
    feats = []
    for i, rate in enumerate(dilation_rates):
        w = params["wdil"][i].reshape(Cin, 3, 3, Cmid).transpose(3, 0, 1, 2)  # OIHW
        conv = jax.lax.conv_general_dilated(
            x, w, window_strides=(1, 1), padding=[(rate, rate), (rate, rate)],
            rhs_dilation=(rate, rate), dimension_numbers=("NCHW", "OIHW", "NCHW"))
        conv = conv + params["bdil"][i][None, :, None, None]
        pooled = jnp.mean(conv, axis=(2, 3))
        feats.append(jnp.maximum(pooled @ params["wgap"] + params["bgap"], 0.0))
    lf = jnp.concatenate(feats, axis=-1)
    lf = jnp.broadcast_to(lf[:, None, None, :], (B, S, S, lf.shape[-1]))      # bilinear 1x1 -> SxS
    t1 = jnp.maximum(lf @ params["w1"] + params["b1"], 0.0)
    t2 = t1 @ params["w2"]
    mean = jnp.mean(t2, axis=(0, 1, 2), keepdims=True)
    var = jnp.mean((t2 - mean) ** 2, axis=(0, 1, 2), keepdims=True)
    bn = (t2 - mean) * jax.lax.rsqrt(var + 1e-5) * params["gamma"] + params["beta"]
    att = jnp.maximum(bn, 0.0) @ params["w3"] + params["b3"]
    att = jnp.where(att > 20.0, att, jnp.log1p(jnp.exp(jnp.minimum(att, 20.0))))
    nrm = jnp.maximum(jnp.sqrt(jnp.sum(bn * bn, axis=-1, keepdims=True)), 1e-12)
    out = bn / nrm * att
    return out.transpose(0, 3, 1, 2)


if __name__ == "__main__":
    # Small config consistent with the module:
    #   in_channel=4, out_channel=16, hidden_channel=32 (divisible by 4), img_size=256 -> S=8
    B, Cin, Hsp, Wsp = 2, 4, 16, 16
    out_channel, hidden_channel, img_size = 16, 32, 256

    key = jax.random.PRNGKey(0)
    kx, kp = jax.random.split(key)
    x = jax.random.normal(kx, (B, Cin, Hsp, Wsp), dtype=jnp.float32)
    params = init_params(kp, Cin, out_channel, hidden_channel)

    fwd = jax.jit(functools.partial(dolg_local_branch, img_size=img_size))
    y = jax.block_until_ready(fwd(x, params))

    S = img_size // 32
    assert y.shape == (B, out_channel, S, S), y.shape
    assert bool(jnp.all(jnp.isfinite(y)))

    # Masked-reduction kernel vs direct pooled-conv tap means (single-block nk=1 path).
    taps_kernel = multi_atrous_tap_means(x, (6, 12, 18))
    taps_ref = reference_tap_means(x, (6, 12, 18))
    assert np.allclose(np.asarray(taps_kernel), np.asarray(taps_ref), rtol=2e-2, atol=2e-3), (
        float(np.max(np.abs(np.asarray(taps_kernel) - np.asarray(taps_ref)))))

    # Same check with a forced small HW tile to exercise the multi-step (nk>1) resident-mask /
    # dynamic-slice accumulation path.
    taps_tiled = multi_atrous_tap_means(x, (6, 12, 18), force_hw_tile=128)
    assert np.allclose(np.asarray(taps_tiled), np.asarray(taps_ref), rtol=2e-2, atol=2e-3), (
        float(np.max(np.abs(np.asarray(taps_tiled) - np.asarray(taps_ref)))))

    # End-to-end check (loose tolerance: BN over 2 batches amplifies MXU default-precision noise).
    y_ref = jax.block_until_ready(dolg_local_branch_reference(x, params, img_size))
    assert np.allclose(np.asarray(y), np.asarray(y_ref), rtol=1e-1, atol=8e-2), (
        float(np.max(np.abs(np.asarray(y) - np.asarray(y_ref)))))

    print("KERNEL_OK")
</pallas_src>

<mosaic_0001>
module attributes {stable_mosaic.version = 11 : i64} {
  func.func @gap_reduce_kernel(%arg0: i32, %arg1: i32, %arg2: i32, %arg3: memref<1x4x256xf32, #tpu.memory_space<vmem>>, %arg4: memref<256x32xf32, #tpu.memory_space<vmem>>, %arg5: memref<1x4x32xf32, #tpu.memory_space<vmem>>) attributes {dimension_semantics = [#tpu.dimension_semantics<parallel>, #tpu.dimension_semantics<parallel>, #tpu.dimension_semantics<arbitrary>], iteration_bounds = array<i64: 2, 1, 1>, scalar_prefetch = 0 : i64, scratch_operands = 0 : i64, tpu.core_type = #tpu.core_type<tc>, window_params = [{transform_indices = @transform_0, window_bounds = array<i64: 1, 4, 256>}, {pipeline_mode = #tpu.pipeline_mode<synchronous>, transform_indices = @transform_1, window_bounds = array<i64: 256, 32>}, {transform_indices = @transform_2, window_bounds = array<i64: 1, 4, 32>}]} {
    %c0_i32 = arith.constant 0 : i32
    %0 = arith.cmpi eq, %arg2, %c0_i32 : i32
    %1 = arith.extui %0 : i1 to i32
    %c0_i32_0 = arith.constant 0 : i32
    %2 = arith.cmpi ne, %1, %c0_i32_0 : i32
    scf.if %2 {
      %cst_11 = arith.constant 0.000000e+00 : f32
      %13 = vector.broadcast %cst_11 : f32 to vector<1x4x32xf32>
      %c0_12 = arith.constant 0 : index
      %c0_13 = arith.constant 0 : index
      %c0_14 = arith.constant 0 : index
      %14 = vector.load %arg5[%c0_12, %c0_13, %c0_14] : memref<1x4x32xf32, #tpu.memory_space<vmem>>, vector<1x4x32xf32>
      tpu.vector_store %arg5[%c0_12, %c0_13, %c0_14], %13 {strides = array<i32>} : memref<1x4x32xf32, #tpu.memory_space<vmem>>, vector<1x4x32xf32>,
    } else {
    }
    %c0 = arith.constant 0 : index
    %c0_1 = arith.constant 0 : index
    %3 = vector.load %arg4[%c0, %c0_1] : memref<256x32xf32, #tpu.memory_space<vmem>>, vector<256x32xf32>
    %c0_2 = arith.constant 0 : index
    %c0_3 = arith.constant 0 : index
    %c0_4 = arith.constant 0 : index
    %4 = vector.load %arg5[%c0_2, %c0_3, %c0_4] : memref<1x4x32xf32, #tpu.memory_space<vmem>>, vector<1x4x32xf32>
    %5 = vector.shape_cast %4 : vector<1x4x32xf32> to vector<4x32xf32>
    %c0_5 = arith.constant 0 : index
    %c0_6 = arith.constant 0 : index
    %c0_7 = arith.constant 0 : index
    %6 = vector.load %arg3[%c0_5, %c0_6, %c0_7] : memref<1x4x256xf32, #tpu.memory_space<vmem>>, vector<1x4x256xf32>
    %7 = vector.shape_cast %6 : vector<1x4x256xf32> to vector<4x256xf32>
    %cst = arith.constant dense<0.000000e+00> : vector<4x32xf32>
    %8 = tpu.matmul %7, %3, %cst {dimension_numbers = #tpu.dot_dimension_numbers<[1], [0], [0], [1], [0, 0, 1, 1], [], []>} : vector<4x256xf32>, vector<256x32xf32>, vector<4x32xf32> -> vector<4x32xf32>
    %9 = arith.addf %5, %8 : vector<4x32xf32>
    %c0_8 = arith.constant 0 : index
    %c0_9 = arith.constant 0 : index
    %c0_10 = arith.constant 0 : index
    %10 = vector.load %arg5[%c0_8, %c0_9, %c0_10] : memref<1x4x32xf32, #tpu.memory_space<vmem>>, vector<1x4x32xf32>
    %11 = vector.shape_cast %10 : vector<1x4x32xf32> to vector<4x32xf32>
    %12 = vector.shape_cast %9 : vector<4x32xf32> to vector<1x4x32xf32>
    tpu.vector_store %arg5[%c0_8, %c0_9, %c0_10], %12 {strides = array<i32>} : memref<1x4x32xf32, #tpu.memory_space<vmem>>, vector<1x4x32xf32>,
    return
  }
  func.func @transform_0(%arg0: i32, %arg1: i32, %arg2: i32) -> (i32, i32, i32) {
    %c0_i32 = arith.constant 0 : i32
    return %arg0, %arg1, %arg2 : i32, i32, i32
  }
  func.func @transform_1(%arg0: i32, %arg1: i32, %arg2: i32) -> (i32, i32) {
    %c0_i32 = arith.constant 0 : i32
    %c0_i32_0 = arith.constant 0 : i32
    %c0_i32_1 = arith.constant 0 : i32
    return %c0_i32, %c0_i32_0 : i32, i32
  }
  func.func @transform_2(%arg0: i32, %arg1: i32, %arg2: i32) -> (i32, i32, i32) {
    %c0_i32 = arith.constant 0 : i32
    %c0_i32_0 = arith.constant 0 : i32
    return %arg0, %arg1, %c0_i32 : i32, i32, i32
  }
}

module attributes {stable_mosaic.version = 11 : i64} {
  func.func @tail_kernel(%arg0: i32, %arg1: memref<3x2x36xf32, #tpu.memory_space<vmem>>, %arg2: memref<3x36x8xf32, #tpu.memory_space<vmem>>, %arg3: memref<3x8xf32, #tpu.memory_space<vmem>>, %arg4: memref<8x16xf32, #tpu.memory_space<vmem>>, %arg5: memref<1x16xf32, #tpu.memory_space<vmem>>, %arg6: memref<48x16xf32, #tpu.memory_space<vmem>>, %arg7: memref<1x16xf32, #tpu.memory_space<vmem>>, %arg8: memref<16x16xf32, #tpu.memory_space<vmem>>, %arg9: memref<1x16xf32, #tpu.memory_space<vmem>>, %arg10: memref<1x16xf32, #tpu.memory_space<vmem>>, %arg11: memref<16x16xf32, #tpu.memory_space<vmem>>, %arg12: memref<1x16xf32, #tpu.memory_space<vmem>>, %arg13: memref<2x16x64xf32, #tpu.memory_space<vmem>>, %arg14: memref<3x2x8xf32, #tpu.memory_space<vmem>>) attributes {dimension_semantics = [#tpu.dimension_semantics<arbitrary>], iteration_bounds = array<i64: 1>, scalar_prefetch = 0 : i64, scratch_operands = 1 : i64, tpu.core_type = #tpu.core_type<tc>, window_params = [{transform_indices = @transform_0, window_bounds = array<i64: 3, 2, 36>}, {transform_indices = @transform_1, window_bounds = array<i64: 3, 36, 8>}, {pipeline_mode = #tpu.pipeline_mode<synchronous>, transform_indices = @transform_2, window_bounds = array<i64: 3, 8>}, {pipeline_mode = #tpu.pipeline_mode<synchronous>, transform_indices = @transform_3, window_bounds = array<i64: 8, 16>}, {pipeline_mode = #tpu.pipeline_mode<synchronous>, transform_indices = @transform_4, window_bounds = array<i64: 1, 16>}, {pipeline_mode = #tpu.pipeline_mode<synchronous>, transform_indices = @transform_5, window_bounds = array<i64: 48, 16>}, {pipeline_mode = #tpu.pipeline_mode<synchronous>, transform_indices = @transform_6, window_bounds = array<i64: 1, 16>}, {pipeline_mode = #tpu.pipeline_mode<synchronous>, transform_indices = @transform_7, window_bounds = array<i64: 16, 16>}, {pipeline_mode = #tpu.pipeline_mode<synchronous>, transform_indices = @transform_8, window_bounds = array<i64: 1, 16>}, {pipeline_mode = #tpu.pipeline_mode<synchronous>, transform_indices = @transform_9, window_bounds = array<i64: 1, 16>}, {pipeline_mode = #tpu.pipeline_mode<synchronous>, transform_indices = @transform_10, window_bounds = array<i64: 16, 16>}, {pipeline_mode = #tpu.pipeline_mode<synchronous>, transform_indices = @transform_11, window_bounds = array<i64: 1, 16>}, {pipeline_mode = #tpu.pipeline_mode<synchronous>, transform_indices = @transform_12, window_bounds = array<i64: 2, 16, 64>}]} {
    %c0_i32 = arith.constant 0 : i32
    %0 = arith.cmpi eq, %arg0, %c0_i32 : i32
    %1 = arith.extui %0 : i1 to i32
    %c0_i32_0 = arith.constant 0 : i32
    %2 = arith.cmpi ne, %1, %c0_i32_0 : i32
    scf.if %2 {
      %cst_38 = arith.constant 0.000000e+00 : f32
      %39 = vector.broadcast %cst_38 : f32 to vector<3x2x8xf32>
      %c0_39 = arith.constant 0 : index
      %c0_40 = arith.constant 0 : index
      %c0_41 = arith.constant 0 : index
      %40 = vector.load %arg14[%c0_39, %c0_40, %c0_41] : memref<3x2x8xf32, #tpu.memory_space<vmem>>, vector<3x2x8xf32>
      tpu.vector_store %arg14[%c0_39, %c0_40, %c0_41], %39 {strides = array<i32>} : memref<3x2x8xf32, #tpu.memory_space<vmem>>, vector<3x2x8xf32>,
    } else {
    }
    %c0 = arith.constant 0 : index
    %c0_1 = arith.constant 0 : index
    %c0_2 = arith.constant 0 : index
    %3 = vector.load %arg14[%c0, %c0_1, %c0_2] : memref<3x2x8xf32, #tpu.memory_space<vmem>>, vector<1x2x8xf32>
    %4 = vector.shape_cast %3 : vector<1x2x8xf32> to vector<2x8xf32>
    %c0_3 = arith.constant 0 : index
    %c0_4 = arith.constant 0 : index
    %c0_5 = arith.constant 0 : index
    %5 = vector.load %arg1[%c0_3, %c0_4, %c0_5] : memref<3x2x36xf32, #tpu.memory_space<vmem>>, vector<1x2x36xf32>
    %6 = vector.shape_cast %5 : vector<1x2x36xf32> to vector<2x36xf32>
    %c0_6 = arith.constant 0 : index
    %c0_7 = arith.constant 0 : index
    %c0_8 = arith.constant 0 : index
    %7 = vector.load %arg2[%c0_6, %c0_7, %c0_8] : memref<3x36x8xf32, #tpu.memory_space<vmem>>, vector<1x36x8xf32>
    %8 = vector.shape_cast %7 : vector<1x36x8xf32> to vector<36x8xf32>
    %cst = arith.constant dense<0.000000e+00> : vector<2x8xf32>
    %9 = tpu.matmul %6, %8, %cst {dimension_numbers = #tpu.dot_dimension_numbers<[1], [0], [0], [1], [0, 0, 1, 1], [], []>} : vector<2x36xf32>, vector<36x8xf32>, vector<2x8xf32> -> vector<2x8xf32>
    %10 = arith.addf %4, %9 : vector<2x8xf32>
    %c0_9 = arith.constant 0 : index
    %c0_10 = arith.constant 0 : index
    %c0_11 = arith.constant 0 : index
    %11 = vector.load %arg14[%c0_9, %c0_10, %c0_11] : memref<3x2x8xf32, #tpu.memory_space<vmem>>, vector<1x2x8xf32>
    %12 = vector.shape_cast %11 : vector<1x2x8xf32> to vector<2x8xf32>
    %13 = vector.shape_cast %10 : vector<2x8xf32> to vector<1x2x8xf32>
    tpu.vector_store %arg14[%c0_9, %c0_10, %c0_11], %13 {strides = array<i32>} : memref<3x2x8xf32, #tpu.memory_space<vmem>>, vector<1x2x8xf32>,
    %c1 = arith.constant 1 : index
    %c0_12 = arith.constant 0 : index
    %c0_13 = arith.constant 0 : index
    %14 = vector.load %arg14[%c1, %c0_12, %c0_13] : memref<3x2x8xf32, #tpu.memory_space<vmem>>, vector<1x2x8xf32>
    %15 = vector.shape_cast %14 : vector<1x2x8xf32> to vector<2x8xf32>
    %c1_14 = arith.constant 1 : index
    %c0_15 = arith.constant 0 : index
    %c0_16 = arith.constant 0 : index
    %16 = vector.load %arg1[%c1_14, %c0_15, %c0_16] : memref<3x2x36xf32, #tpu.memory_space<vmem>>, vector<1x2x36xf32>
    %17 = vector.shape_cast %16 : vector<1x2x36xf32> to vector<2x36xf32>
    %c1_17 = arith.constant 1 : index
    %c0_18 = arith.constant 0 : index
    %c0_19 = arith.constant 0 : index
    %18 = vector.load %arg2[%c1_17, %c0_18, %c0_19] : memref<3x36x8xf32, #tpu.memory_space<vmem>>, vector<1x36x8xf32>
    %19 = vector.shape_cast %18 : vector<1x36x8xf32> to vector<36x8xf32>
    %cst_20 = arith.constant dense<0.000000e+00> : vector<2x8xf32>
    %20 = tpu.matmul %17, %19, %cst_20 {dimension_numbers = #tpu.dot_dimension_numbers<[1], [0], [0], [1], [0, 0, 1, 1], [], []>} : vector<2x36xf32>, vector<36x8xf32>, vector<2x8xf32> -> vector<2x8xf32>
    %21 = arith.addf %15, %20 : vector<2x8xf32>
    %c1_21 = arith.constant 1 : index
    %c0_22 = arith.constant 0 : index
    %c0_23 = arith.constant 0 : index
    %22 = vector.load %arg14[%c1_21, %c0_22, %c0_23] : memref<3x2x8xf32, #tpu.memory_space<vmem>>, vector<1x2x8xf32>
    %23 = vector.shape_cast %22 : vector<1x2x8xf32> to vector<2x8xf32>
    %24 = vector.shape_cast %21 : vector<2x8xf32> to vector<1x2x8xf32>
    tpu.vector_store %arg14[%c1_21, %c0_22, %c0_23], %24 {strides = array<i32>} : memref<3x2x8xf32, #tpu.memory_space<vmem>>, vector<1x2x8xf32>,
    %c2 = arith.constant 2 : index
    %c0_24 = arith.constant 0 : index
    %c0_25 = arith.constant 0 : index
    %25 = vector.load %arg14[%c2, %c0_24, %c0_25] : memref<3x2x8xf32, #tpu.memory_space<vmem>>, vector<1x2x8xf32>
    %26 = vector.shape_cast %25 : vector<1x2x8xf32> to vector<2x8xf32>
    %c2_26 = arith.constant 2 : index
    %c0_27 = arith.constant 0 : index
    %c0_28 = arith.constant 0 : index
    %27 = vector.load %arg1[%c2_26, %c0_27, %c0_28] : memref<3x2x36xf32, #tpu.memory_space<vmem>>, vector<1x2x36xf32>
    %28 = vector.shape_cast %27 : vector<1x2x36xf32> to vector<2x36xf32>
    %c2_29 = arith.constant 2 : index
    %c0_30 = arith.constant 0 : index
    %c0_31 = arith.constant 0 : index
    %29 = vector.load %arg2[%c2_29, %c0_30, %c0_31] : memref<3x36x8xf32, #tpu.memory_space<vmem>>, vector<1x36x8xf32>
    %30 = vector.shape_cast %29 : vector<1x36x8xf32> to vector<36x8xf32>
    %cst_32 = arith.constant dense<0.000000e+00> : vector<2x8xf32>
    %31 = tpu.matmul %28, %30, %cst_32 {dimension_numbers = #tpu.dot_dimension_numbers<[1], [0], [0], [1], [0, 0, 1, 1], [], []>} : vector<2x36xf32>, vector<36x8xf32>, vector<2x8xf32> -> vector<2x8xf32>
    %32 = arith.addf %26, %31 : vector<2x8xf32>
    %c2_33 = arith.constant 2 : index
    %c0_34 = arith.constant 0 : index
    %c0_35 = arith.constant 0 : index
    %33 = vector.load %arg14[%c2_33, %c0_34, %c0_35] : memref<3x2x8xf32, #tpu.memory_space<vmem>>, vector<1x2x8xf32>
    %34 = vector.shape_cast %33 : vector<1x2x8xf32> to vector<2x8xf32>
    %35 = vector.shape_cast %32 : vector<2x8xf32> to vector<1x2x8xf32>
    tpu.vector_store %arg14[%c2_33, %c0_34, %c0_35], %35 {strides = array<i32>} : memref<3x2x8xf32, #tpu.memory_space<vmem>>, vector<1x2x8xf32>,
    %c0_i32_36 = arith.constant 0 : i32
    %36 = arith.cmpi eq, %arg0, %c0_i32_36 : i32
    %37 = arith.extui %36 : i1 to i32
    %c0_i32_37 = arith.constant 0 : i32
    %38 = arith.cmpi ne, %37, %c0_i32_37 : i32
    scf.if %38 {
      %c0_38 = arith.constant 0 : index
      %c0_39 = arith.constant 0 : index
      %c0_40 = arith.constant 0 : index
      %39 = vector.load %arg14[%c0_38, %c0_39, %c0_40] : memref<3x2x8xf32, #tpu.memory_space<vmem>>, vector<1x2x8xf32>
      %40 = vector.shape_cast %39 : vector<1x2x8xf32> to vector<2x8xf32>
      %c0_41 = arith.constant 0 : index
      %c0_42 = arith.constant 0 : index
      %41 = vector.load %arg3[%c0_41, %c0_42] : memref<3x8xf32, #tpu.memory_space<vmem>>, vector<1x8xf32>
      %42 = vector.broadcast %41 : vector<1x8xf32> to vector<2x8xf32>
      %43 = arith.addf %40, %42 : vector<2x8xf32>
      %c0_43 = arith.constant 0 : index
      %c0_44 = arith.constant 0 : index
      %44 = vector.load %arg4[%c0_43, %c0_44] : memref<8x16xf32, #tpu.memory_space<vmem>>, vector<8x16xf32>
      %cst_45 = arith.constant dense<0.000000e+00> : vector<2x16xf32>
      %45 = tpu.matmul %43, %44, %cst_45 {dimension_numbers = #tpu.dot_dimension_numbers<[1], [0], [0], [1], [0, 0, 1, 1], [], []>} : vector<2x8xf32>, vector<8x16xf32>, vector<2x16xf32> -> vector<2x16xf32>
      %c0_46 = arith.constant 0 : index
      %c0_47 = arith.constant 0 : index
      %46 = vector.load %arg5[%c0_46, %c0_47] : memref<1x16xf32, #tpu.memory_space<vmem>>, vector<1x16xf32>
      %47 = vector.broadcast %46 : vector<1x16xf32> to vector<2x16xf32>
      %48 = arith.addf %45, %47 : vector<2x16xf32>
      %cst_48 = arith.constant 0.000000e+00 : f32
      %49 = vector.broadcast %cst_48 : f32 to vector<2x16xf32>
      %50 = arith.maximumf %48, %49 : vector<2x16xf32>
      %c1_49 = arith.constant 1 : index
      %c0_50 = arith.constant 0 : index
      %c0_51 = arith.constant 0 : index
      %51 = vector.load %arg14[%c1_49, %c0_50, %c0_51] : memref<3x2x8xf32, #tpu.memory_space<vmem>>, vector<1x2x8xf32>
      %52 = vector.shape_cast %51 : vector<1x2x8xf32> to vector<2x8xf32>
      %c1_52 = arith.constant 1 : index
      %c0_53 = arith.constant 0 : index
      %53 = vector.load %arg3[%c1_52, %c0_53] : memref<3x8xf32, #tpu.memory_space<vmem>>, vector<1x8xf32>
      %54 = vector.broadcast %53 : vector<1x8xf32> to vector<2x8xf32>
      %55 = arith.addf %52, %54 : vector<2x8xf32>
      %c0_54 = arith.constant 0 : index
      %c0_55 = arith.constant 0 : index
      %56 = vector.load %arg4[%c0_54, %c0_55] : memref<8x16xf32, #tpu.memory_space<vmem>>, vector<8x16xf32>
      %cst_56 = arith.constant dense<0.000000e+00> : vector<2x16xf32>
      %57 = tpu.matmul %55, %56, %cst_56 {dimension_numbers = #tpu.dot_dimension_numbers<[1], [0], [0], [1], [0, 0, 1, 1], [], []>} : vector<2x8xf32>, vector<8x16xf32>, vector<2x16xf32> -> vector<2x16xf32>
      %c0_57 = arith.constant 0 : index
      %c0_58 = arith.constant 0 : index
      %58 = vector.load %arg5[%c0_57, %c0_58] : memref<1x16xf32, #tpu.memory_space<vmem>>, vector<1x16xf32>
      %59 = vector.broadcast %58 : vector<1x16xf32> to vector<2x16xf32>
      %60 = arith.addf %57, %59 : vector<2x16xf32>
      %cst_59 = arith.constant 0.000000e+00 : f32
      %61 = vector.broadcast %cst_59 : f32 to vector<2x16xf32>
      %62 = arith.maximumf %60, %61 : vector<2x16xf32>
      %c2_60 = arith.constant 2 : index
      %c0_61 = arith.constant 0 : index
      %c0_62 = arith.constant 0 : index
      %63 = vector.load %arg14[%c2_60, %c0_61, %c0_62] : memref<3x2x8xf32, #tpu.memory_space<vmem>>, vector<1x2x8xf32>
      %64 = vector.shape_cast %63 : vector<1x2x8xf32> to vector<2x8xf32>
      %c2_63 = arith.constant 2 : index
      %c0_64 = arith.constant 0 : index
      %65 = vector.load %arg3[%c2_63, %c0_64] : memref<3x8xf32, #tpu.memory_space<vmem>>, vector<1x8xf32>
      %66 = vector.broadcast %65 : vector<1x8xf32> to vector<2x8xf32>
      %67 = arith.addf %64, %66 : vector<2x8xf32>
      %c0_65 = arith.constant 0 : index
      %c0_66 = arith.constant 0 : index
      %68 = vector.load %arg4[%c0_65, %c0_66] : memref<8x16xf32, #tpu.memory_space<vmem>>, vector<8x16xf32>
      %cst_67 = arith.constant dense<0.000000e+00> : vector<2x16xf32>
      %69 = tpu.matmul %67, %68, %cst_67 {dimension_numbers = #tpu.dot_dimension_numbers<[1], [0], [0], [1], [0, 0, 1, 1], [], []>} : vector<2x8xf32>, vector<8x16xf32>, vector<2x16xf32> -> vector<2x16xf32>
      %c0_68 = arith.constant 0 : index
      %c0_69 = arith.constant 0 : index
      %70 = vector.load %arg5[%c0_68, %c0_69] : memref<1x16xf32, #tpu.memory_space<vmem>>, vector<1x16xf32>
      %71 = vector.broadcast %70 : vector<1x16xf32> to vector<2x16xf32>
      %72 = arith.addf %69, %71 : vector<2x16xf32>
      %cst_70 = arith.constant 0.000000e+00 : f32
      %73 = vector.broadcast %cst_70 : f32 to vector<2x16xf32>
      %74 = arith.maximumf %72, %73 : vector<2x16xf32>
      %75 = tpu.concatenate %50, %62, %74 in 1 : vector<2x16xf32>, vector<2x16xf32>, vector<2x16xf32> -> vector<2x48xf32>
      %c0_71 = arith.constant 0 : index
      %c0_72 = arith.constant 0 : index
      %76 = vector.load %arg6[%c0_71, %c0_72] : memref<48x16xf32, #tpu.memory_space<vmem>>, vector<48x16xf32>
      %cst_73 = arith.constant dense<0.000000e+00> : vector<2x16xf32>
      %77 = tpu.matmul %75, %76, %cst_73 {dimension_numbers = #tpu.dot_dimension_numbers<[1], [0], [0], [1], [0, 0, 1, 1], [], []>} : vector<2x48xf32>, vector<48x16xf32>, vector<2x16xf32> -> vector<2x16xf32>
      %c0_74 = arith.constant 0 : index
      %c0_75 = arith.constant 0 : index
      %78 = vector.load %arg7[%c0_74, %c0_75] : memref<1x16xf32, #tpu.memory_space<vmem>>, vector<1x16xf32>
      %79 = vector.broadcast %78 : vector<1x16xf32> to vector<2x16xf32>
      %80 = arith.addf %77, %79 : vector<2x16xf32>
      %cst_76 = arith.constant 0.000000e+00 : f32
      %81 = vector.broadcast %cst_76 : f32 to vector<2x16xf32>
      %82 = arith.maximumf %80, %81 : vector<2x16xf32>
      %c0_77 = arith.constant 0 : index
      %c0_78 = arith.constant 0 : index
      %83 = vector.load %arg8[%c0_77, %c0_78] : memref<16x16xf32, #tpu.memory_space<vmem>>, vector<16x16xf32>
      %cst_79 = arith.constant dense<0.000000e+00> : vector<2x16xf32>
      %84 = tpu.matmul %82, %83, %cst_79 {dimension_numbers = #tpu.dot_dimension_numbers<[1], [0], [0], [1], [0, 0, 1, 1], [], []>} : vector<2x16xf32>, vector<16x16xf32>, vector<2x16xf32> -> vector<2x16xf32>
      %cst_80 = arith.constant dense<0.000000e+00> : vector<16xf32>
      %85 = vector.multi_reduction <add>, %84, %cst_80 [0] : vector<2x16xf32> to vector<16xf32>
      %86 = vector.shape_cast %85 : vector<16xf32> to vector<1x16xf32>
      %cst_81 = arith.constant 2.000000e+00 : f32
      %87 = vector.broadcast %cst_81 : f32 to vector<1x16xf32>
      %88 = arith.divf %86, %87 : vector<1x16xf32>
      %89 = vector.broadcast %88 : vector<1x16xf32> to vector<2x16xf32>
      %90 = arith.subf %84, %89 : vector<2x16xf32>
      %91 = arith.mulf %90, %90 : vector<2x16xf32>
      %cst_82 = arith.constant dense<0.000000e+00> : vector<16xf32>
      %92 = vector.multi_reduction <add>, %91, %cst_82 [0] : vector<2x16xf32> to vector<16xf32>
      %93 = vector.shape_cast %92 : vector<16xf32> to vector<1x16xf32>
      %cst_83 = arith.constant 2.000000e+00 : f32
      %94 = vector.broadcast %cst_83 : f32 to vector<1x16xf32>
      %95 = arith.divf %93, %94 : vector<1x16xf32>
      %96 = vector.broadcast %88 : vector<1x16xf32> to vector<2x16xf32>
      %97 = arith.subf %84, %96 : vector<2x16xf32>
      %cst_84 = arith.constant 9.99999974E-6 : f32
      %98 = vector.broadcast %cst_84 : f32 to vector<1x16xf32>
      %99 = arith.addf %95, %98 : vector<1x16xf32>
      %100 = math.rsqrt %99 : vector<1x16xf32>
      %101 = vector.broadcast %100 : vector<1x16xf32> to vector<2x16xf32>
      %102 = arith.mulf %97, %101 : vector<2x16xf32>
      %c0_85 = arith.constant 0 : index
      %c0_86 = arith.constant 0 : index
      %103 = vector.load %arg9[%c0_85, %c0_86] : memref<1x16xf32, #tpu.memory_space<vmem>>, vector<1x16xf32>
      %104 = vector.broadcast %103 : vector<1x16xf32> to vector<2x16xf32>
      %105 = arith.mulf %102, %104 : vector<2x16xf32>
      %c0_87 = arith.constant 0 : index
      %c0_88 = arith.constant 0 : index
      %106 = vector.load %arg10[%c0_87, %c0_88] : memref<1x16xf32, #tpu.memory_space<vmem>>, vector<1x16xf32>
      %107 = vector.broadcast %106 : vector<1x16xf32> to vector<2x16xf32>
      %108 = arith.addf %105, %107 : vector<2x16xf32>
      %cst_89 = arith.constant 0.000000e+00 : f32
      %109 = vector.broadcast %cst_89 : f32 to vector<2x16xf32>
      %110 = arith.maximumf %108, %109 : vector<2x16xf32>
      %c0_90 = arith.constant 0 : index
      %c0_91 = arith.constant 0 : index
      %111 = vector.load %arg11[%c0_90, %c0_91] : memref<16x16xf32, #tpu.memory_space<vmem>>, vector<16x16xf32>
      %cst_92 = arith.constant dense<0.000000e+00> : vector<2x16xf32>
      %112 = tpu.matmul %110, %111, %cst_92 {dimension_numbers = #tpu.dot_dimension_numbers<[1], [0], [0], [1], [0, 0, 1, 1], [], []>} : vector<2x16xf32>, vector<16x16xf32>, vector<2x16xf32> -> vector<2x16xf32>
      %c0_93 = arith.constant 0 : index
      %c0_94 = arith.constant 0 : index
      %113 = vector.load %arg12[%c0_93, %c0_94] : memref<1x16xf32, #tpu.memory_space<vmem>>, vector<1x16xf32>
      %114 = vector.broadcast %113 : vector<1x16xf32> to vector<2x16xf32>
      %115 = arith.addf %112, %114 : vector<2x16xf32>
      %cst_95 = arith.constant 2.000000e+01 : f32
      %116 = vector.broadcast %cst_95 : f32 to vector<2x16xf32>
      %117 = arith.cmpf ogt, %115, %116 : vector<2x16xf32>
      %cst_96 = arith.constant 2.000000e+01 : f32
      %118 = vector.broadcast %cst_96 : f32 to vector<2x16xf32>
      %119 = arith.minimumf %115, %118 : vector<2x16xf32>
      %120 = math.exp %119 : vector<2x16xf32>
      %121 = math.log1p %120 : vector<2x16xf32>
      %122 = arith.select %117, %115, %121 : vector<2x16xi1>, vector<2x16xf32>
      %123 = arith.mulf %108, %108 : vector<2x16xf32>
      %cst_97 = arith.constant dense<0.000000e+00> : vector<2xf32>
      %124 = vector.multi_reduction <add>, %123, %cst_97 [1] : vector<2x16xf32> to vector<2xf32>
      %125 = vector.shape_cast %124 : vector<2xf32> to vector<2x1xf32>
      %cst_98 = arith.constant 1.000000e-24 : f32
      %126 = vector.broadcast %cst_98 : f32 to vector<2x1xf32>
      %127 = arith.maximumf %125, %126 : vector<2x1xf32>
      %128 = math.rsqrt %127 : vector<2x1xf32>
      %129 = vector.broadcast %128 : vector<2x1xf32> to vector<2x16xf32>
      %130 = arith.mulf %108, %129 : vector<2x16xf32>
      %131 = arith.mulf %130, %122 : vector<2x16xf32>
      %132 = vector.shape_cast %131 : vector<2x16xf32> to vector<2x16x1xf32>
      %133 = vector.shape_cast %132 : vector<2x16x1xf32> to vector<2x16x1xf32>
      %134 = vector.broadcast %133 : vector<2x16x1xf32> to vector<2x16x64xf32>
      %c0_99 = arith.constant 0 : index
      %c0_100 = arith.constant 0 : index
      %c0_101 = arith.constant 0 : index
      %135 = vector.load %arg13[%c0_99, %c0_100, %c0_101] : memref<2x16x64xf32, #tpu.memory_space<vmem>>, vector<2x16x64xf32>
      tpu.vector_store %arg13[%c0_99, %c0_100, %c0_101], %134 {strides = array<i32>} : memref<2x16x64xf32, #tpu.memory_space<vmem>>, vector<2x16x64xf32>,
    } else {
    }
    return
  }
  func.func @transform_0(%arg0: i32) -> (i32, i32, i32) {
    %c0_i32 = arith.constant 0 : i32
    %c0_i32_0 = arith.constant 0 : i32
    %c0_i32_1 = arith.constant 0 : i32
    return %c0_i32, %c0_i32_0, %arg0 : i32, i32, i32
  }
  func.func @transform_1(%arg0: i32) -> (i32, i32, i32) {
    %c0_i32 = arith.constant 0 : i32
    %c0_i32_0 = arith.constant 0 : i32
    %c0_i32_1 = arith.constant 0 : i32
    return %c0_i32, %arg0, %c0_i32_0 : i32, i32, i32
  }
  func.func @transform_2(%arg0: i32) -> (i32, i32) {
    %c0_i32 = arith.constant 0 : i32
    %c0_i32_0 = arith.constant 0 : i32
    %c0_i32_1 = arith.constant 0 : i32
    return %c0_i32, %c0_i32_0 : i32, i32
  }
  func.func @transform_3(%arg0: i32) -> (i32, i32) {
    %c0_i32 = arith.constant 0 : i32
    %c0_i32_0 = arith.constant 0 : i32
    %c0_i32_1 = arith.constant 0 : i32
    return %c0_i32, %c0_i32_0 : i32, i32
  }
  func.func @transform_4(%arg0: i32) -> (i32, i32) {
    %c0_i32 = arith.constant 0 : i32
    %c0_i32_0 = arith.constant 0 : i32
    %c0_i32_1 = arith.constant 0 : i32
    return %c0_i32, %c0_i32_0 : i32, i32
  }
  func.func @transform_5(%arg0: i32) -> (i32, i32) {
    %c0_i32 = arith.constant 0 : i32
    %c0_i32_0 = arith.constant 0 : i32
    %c0_i32_1 = arith.constant 0 : i32
    return %c0_i32, %c0_i32_0 : i32, i32
  }
  func.func @transform_6(%arg0: i32) -> (i32, i32) {
    %c0_i32 = arith.constant 0 : i32
    %c0_i32_0 = arith.constant 0 : i32
    %c0_i32_1 = arith.constant 0 : i32
    return %c0_i32, %c0_i32_0 : i32, i32
  }
  func.func @transform_7(%arg0: i32) -> (i32, i32) {
    %c0_i32 = arith.constant 0 : i32
    %c0_i32_0 = arith.constant 0 : i32
    %c0_i32_1 = arith.constant 0 : i32
    return %c0_i32, %c0_i32_0 : i32, i32
  }
  func.func @transform_8(%arg0: i32) -> (i32, i32) {
    %c0_i32 = arith.constant 0 : i32
    %c0_i32_0 = arith.constant 0 : i32
    %c0_i32_1 = arith.constant 0 : i32
    return %c0_i32, %c0_i32_0 : i32, i32
  }
  func.func @transform_9(%arg0: i32) -> (i32, i32) {
    %c0_i32 = arith.constant 0 : i32
    %c0_i32_0 = arith.constant 0 : i32
    %c0_i32_1 = arith.constant 0 : i32
    return %c0_i32, %c0_i32_0 : i32, i32
  }
  func.func @transform_10(%arg0: i32) -> (i32, i32) {
    %c0_i32 = arith.constant 0 : i32
    %c0_i32_0 = arith.constant 0 : i32
    %c0_i32_1 = arith.constant 0 : i32
    return %c0_i32, %c0_i32_0 : i32, i32
  }
  func.func @transform_11(%arg0: i32) -> (i32, i32) {
    %c0_i32 = arith.constant 0 : i32
    %c0_i32_0 = arith.constant 0 : i32
    %c0_i32_1 = arith.constant 0 : i32
    return %c0_i32, %c0_i32_0 : i32, i32
  }
  func.func @transform_12(%arg0: i32) -> (i32, i32, i32) {
    %c0_i32 = arith.constant 0 : i32
    %c0_i32_0 = arith.constant 0 : i32
    %c0_i32_1 = arith.constant 0 : i32
    %c0_i32_2 = arith.constant 0 : i32
    return %c0_i32, %c0_i32_0, %c0_i32_1 : i32, i32, i32
  }
}

</mosaic_0001>

<llo_original>
// kernel: dolg_local_branch.2
$region0: #{dolg_local_branch.2}
  #allocation0 [shape = 'u32[]', space=smem, size = 0x4, offset = 0x4, fixed_abs, tag = 'smem constant byte address 0x4 - core index']
  #allocation1 [shape = 'u32[72,128]{1,0:T(1,128)}', space=vmem, size = 0x9000, scoped, tag = 'internal scratch']
  %s0 = inlined_call_operand.vmem [shape: f32[2,4,256], index: 0, kind: input, shape index: {}]
  %s1 = inlined_call_operand.hbm [shape: f32[256,32], index: 1, kind: input, shape index: {}]
  %s2 = inlined_call_operand.vmem [shape: f32[2,4,32], index: 2, kind: output, shape index: {}]
  %s3 = sld [smem:[#allocation0]]
  $region49: #{dolg_local_branch.2} parent=0
    _
  %s5 = ssub.s32 1, %s3
  %s6 = scalar_select 0, %s5, %s3
  $region1: #{dolg_local_branch.2} parent=0
    #allocation2 [shape = 'u8[131072]{0}', space=vmem, size = 0x20000, scoped, tag = 'input window, operand 1, single buffered']
    #allocation3 [shape = 's32[2]{0}', space=sflag, size = 0x8, scoped, tag = 'scoped memory for dolg_local_branch.2']
    %7 = vsyncpa [#allocation3], 0
    loop: start=0, step=1, limit=4
    $region2: #{dolg_local_branch.2} parent=1 // loop_pre_header
      _
    $region3: #{dolg_local_branch.2} parent=1 // loop_header
      %s9 = sphi 0, %s13
      %p10 = scmp.ge.s32.totalorder %s9, 4
      %s16 = sphi 0, %s35
      %s17 = sphi 0, %s31
      %s18 = sphi 0, %s27
      %s19 = sphi 0, %s16
      %s20 = sphi 0, %s17
      %s21 = sphi 0, %s18
      %s22 = sphi 0, %s19
      %s23 = sphi 0, %s20
      %s24 = sphi 0, %s21
      %s42 = sphi 0, %s44
      %s45 = sphi 0, %s42
      %s46 = sphi 0, %s45
      %s62 = sphi 0, %s46
      %s66 = sphi 0, %s66
      %s68 = sphi 0, %s66
      %s69 = sphi 0, %s68
      %s83 = sphi 0, %s69
      %s91 = sphi 0, %s93
      %s94 = sphi 0, %s91
      %s95 = sphi 0, %s94
      %s111 = sphi 0, %s95
    $region4: #{dolg_local_branch.2} parent=1 // loop_header_branch
      %12 = sbr.rel (%p10) target = $region8
    $region5: #{dolg_local_branch.2} parent=1 // loop_body
      %s14 = ssub.s32 %s9, 1
      %s15 = ssub.s32 %s9, 2
      %s25 = sadd.s32 1, %s18
      %p26 = scmp.ge.s32.totalorder %s25, 1
      %s27 = scalar_select %p26, 0, %s25
      %s28 = sadd.s32 1, %s17
      %s29 = scalar_select %p26, %s28, %s17
      %p30 = scmp.ge.s32.totalorder %s29, 1
      %s31 = scalar_select %p30, 0, %s29
      %s32 = sadd.s32 1, %s16
      %s33 = scalar_select %p30, %s32, %s16
      %p34 = scmp.ge.s32.totalorder %s33, 2
      %s35 = scalar_select %p34, 0, %s33
      %s36 = ssub.s32 %s16, %s35
      %s37 = ssub.s32 %s17, %s31
      %s38 = sor.u32 %s36, %s37
      %s39 = ssub.s32 %s18, %s27
      %s40 = sor.u32 %s38, %s39
      %p41 = scmp.eq.s32.totalorder %s40, 0
      %s43 = sadd.s32 %s42, 1
      %s44 = scalar_select %p41, %s42, %s43
      %p47 = pneg %p41
      %p48 = scmp.eq.s32.totalorder %s9, 1
      %p49 = por %p47, %p48
      %p50 = scmp.ne.s32.totalorder %s42, %s45
      %p51 = scmp.eq.s32.totalorder %s9, 0
      %p52 = por %p50, %p51
      %p53 = scmp.ne.s32.totalorder %s42, %s45
      %p54 = scmp.eq.s32.totalorder %s14, 1
      %p55 = por %p53, %p54
      %p56 = scmp.ne.s32.totalorder %s45, %s46
      %p57 = scmp.eq.s32.totalorder %s14, 0
      %p58 = por %p56, %p57
      %p59 = scmp.ne.s32.totalorder %s45, %s46
      %p60 = scmp.eq.s32.totalorder %s15, 1
      %p61 = por %p59, %p60
      %p63 = scmp.ne.s32.totalorder %s46, %s62
      %p64 = scmp.eq.s32.totalorder %s15, 0
      %p65 = por %p63, %p64
      %s67 = sadd.s32 %s66, 1
      %p70 = scmp.eq.s32.totalorder %s9, 1
      %p71 = scmp.ne.s32.totalorder %s66, %s68
      %p72 = scmp.eq.s32.totalorder %s9, 0
      %p73 = por %p71, %p72
      %p74 = scmp.ne.s32.totalorder %s66, %s68
      %p75 = scmp.eq.s32.totalorder %s14, 1
      %p76 = por %p74, %p75
      %p77 = scmp.ne.s32.totalorder %s68, %s69
      %p78 = scmp.eq.s32.totalorder %s14, 0
      %p79 = por %p77, %p78
      %p80 = scmp.ne.s32.totalorder %s68, %s69
      %p81 = scmp.eq.s32.totalorder %s15, 1
      %p82 = por %p80, %p81
      %p84 = scmp.ne.s32.totalorder %s69, %s83
      %p85 = scmp.eq.s32.totalorder %s15, 0
      %p86 = por %p84, %p85
      %s87 = ssub.s32 %s16, %s35
      %s88 = ssub.s32 %s17, %s31
      %s89 = sor.u32 %s87, %s88
      %p90 = scmp.eq.s32.totalorder %s89, 0
      %s92 = sadd.s32 %s91, 1
      %s93 = scalar_select %p90, %s91, %s92
      %p96 = pneg %p90
      %p97 = scmp.eq.s32.totalorder %s9, 1
      %p98 = por %p96, %p97
      %p99 = scmp.ne.s32.totalorder %s91, %s94
      %p100 = scmp.eq.s32.totalorder %s9, 0
      %p101 = por %p99, %p100
      %p102 = scmp.ne.s32.totalorder %s91, %s94
      %p103 = scmp.eq.s32.totalorder %s14, 1
      %p104 = por %p102, %p103
      %p105 = scmp.ne.s32.totalorder %s94, %s95
      %p106 = scmp.eq.s32.totalorder %s14, 0
      %p107 = por %p105, %p106
      %p108 = scmp.ne.s32.totalorder %s94, %s95
      %p109 = scmp.eq.s32.totalorder %s15, 1
      %p110 = por %p108, %p109
      %p112 = scmp.ne.s32.totalorder %s95, %s111
      %p113 = scmp.eq.s32.totalorder %s15, 0
      %p114 = por %p112, %p113
      %p115 = scmp.le.s32.totalorder 1, %s9
      %p116 = scmp.lt.s32.totalorder %s9, 3
      %p117 = pnand %p115, %p116
      %p118 = pneg %p117
      // Predicated region
      $region9: #{dolg_local_branch.2} parent=5 // pred_check
        _
      $region10: #{dolg_local_branch.2} parent=5 // pred_check_branch
        %120 = sbr.rel (%p117) target = $region12
      $region11: #{dolg_local_branch.2} parent=5 // pred_region
        %s121 = ssub.s32 %s9, 1
        // Predicated region
        $region13: #{dolg_local_branch.2} parent=11 // pred_check
          %p122 = pneg %p79
        $region14: #{dolg_local_branch.2} parent=11 // pred_check_branch
          %124 = sbr.rel (%p122) target = $region16
        $region15: #{dolg_local_branch.2} parent=11 // pred_region
          %126 = vsyncadd [#allocation3], 0
          %s127 = sshll.u32 %s1, 4
          %s128 = int_to_ptr.hbm [resolvable:$true] %s127
          %s129 = sshll.u32 [#allocation2], 4
          %s130 = int_to_ptr.vmem [resolvable:$true] %s129
          %135 = dma.hbm_to_vmem [thread:$0]  %s128, 4096, %s130, [#allocation3], 128, 128, 8
        $region16: #{dolg_local_branch.2} parent=11 // pred_fallthru
          _
      $region12: #{dolg_local_branch.2} parent=5 // pred_fallthru
        _
      %p136 = scmp.lt.s32.totalorder %s9, 2
      // Predicated region
      $region17: #{dolg_local_branch.2} parent=5 // pred_check
        %p137 = pneg %p136
      $region18: #{dolg_local_branch.2} parent=5 // pred_check_branch
        %139 = sbr.rel (%p137) target = $region20
      $region19: #{dolg_local_branch.2} parent=5 // pred_region
        // Predicated region
        $region21: #{dolg_local_branch.2} parent=19 // pred_check
          %p140 = pneg %p52
        $region22: #{dolg_local_branch.2} parent=19 // pred_check_branch
          %142 = sbr.rel (%p140) target = $region24
        $region23: #{dolg_local_branch.2} parent=19 // pred_region
          %s143 = smul.u32 2, %s18
          %p144 = scmp.lt.s32.totalorder %s16, 1
          %s145 = scalar_select %p144, %s16, 1
          %p146 = scmp.lt.s32.totalorder %s17, 0
          %s147 = scalar_select %p146, %s17, 0
          %p148 = scmp.lt.s32.totalorder %s143, 1
          %s149 = scalar_select %p148, %s143, 1
          %s150 = smul.addr %s147, 2
          %s151 = sadd.s32 %s149, %s150
          %s152 = smul.addr %s145, 2
          %s153 = sadd.s32 %s151, %s152
          %s154 = smul.addr %s153, 4
          %s155 = scalar_lea.vmem %s0, %s154
          %s156 = smul.u32 2, %s18
        $region24: #{dolg_local_branch.2} parent=19 // pred_fallthru
          _
      $region20: #{dolg_local_branch.2} parent=5 // pred_fallthru
        _
      %p157 = scmp.le.s32.totalorder 1, %s9
      %p158 = scmp.lt.s32.totalorder %s9, 3
      %p159 = pnand %p157, %p158
      %p160 = pneg %p159
      // Predicated region
      $region25: #{dolg_local_branch.2} parent=5 // pred_check
        _
      $region26: #{dolg_local_branch.2} parent=5 // pred_check_branch
        %162 = sbr.rel (%p159) target = $region28
      $region27: #{dolg_local_branch.2} parent=5 // pred_region
        %s163 = ssub.s32 %s9, 1
        // Predicated region
        $region29: #{dolg_local_branch.2} parent=27 // pred_check
          %p164 = pneg %p79
        $region30: #{dolg_local_branch.2} parent=27 // pred_check_branch
          %166 = sbr.rel (%p164) target = $region32
        $region31: #{dolg_local_branch.2} parent=27 // pred_region
          %168 = dma.done [#allocation3], 4096
        $region32: #{dolg_local_branch.2} parent=27 // pred_fallthru
          _
        %s169 = smul.u32 2, %s21
        %p170 = scmp.lt.s32.totalorder %s19, 1
        %s171 = scalar_select %p170, %s19, 1
        %p172 = scmp.lt.s32.totalorder %s20, 0
        %s173 = scalar_select %p172, %s20, 0
        %p174 = scmp.lt.s32.totalorder %s169, 1
        %s175 = scalar_select %p174, %s169, 1
        %s176 = smul.addr %s173, 2
        %s177 = sadd.s32 %s175, %s176
        %s178 = smul.addr %s171, 2
        %s179 = sadd.s32 %s177, %s178
        %s180 = smul.addr %s179, 4
        %s181 = scalar_lea.vmem %s0, %s180
        %p182 = pneg %p58
        %p183 = pneg %p55
        %p184 = pneg %p79
        %p185 = pneg %p76
        %p186 = pneg %p107
        %p187 = pneg %p104
        %p188 = scmp.lt.s32.totalorder %s19, 1
        %s189 = scalar_select %p188, %s19, 1
        %p190 = scmp.lt.s32.totalorder %s20, 0
        %s191 = scalar_select %p190, %s20, 0
        %s192 = sadd.s32 %s191, %s189
        %s193 = smul.addr %s192, 4
        %s194 = scalar_lea.vmem %s2, %s193
        %s195 = smul.u32 2, %s21
        %p196 = scmp.lt.s32.totalorder %s19, 1
        %s197 = scalar_select %p196, %s19, 1
        %p198 = scmp.lt.s32.totalorder %s20, 0
        %s199 = scalar_select %p198, %s20, 0
        %p200 = scmp.lt.s32.totalorder %s195, 1
        %s201 = scalar_select %p200, %s195, 1
        %s202 = smul.addr %s199, 2
        %s203 = sadd.s32 %s201, %s202
        %s204 = smul.addr %s197, 2
        %s205 = sadd.s32 %s203, %s204
        %s206 = smul.addr %s205, 4
        %s207 = scalar_lea.vmem %s0, %s206
        %s208 = smul.u32 2, %s21
        %p209 = scmp.lt.s32.totalorder %s19, 1
        %s210 = scalar_select %p209, %s19, 1
        %p211 = scmp.lt.s32.totalorder %s20, 0
        %s212 = scalar_select %p211, %s20, 0
        %s213 = sadd.s32 %s212, %s210
        %s214 = smul.addr %s213, 4
        %s215 = scalar_lea.vmem %s2, %s214
        %p216 = scmp.eq.s32.totalorder %s21, 0
        // Predicated region
        $region33: #{dolg_local_branch.2} parent=27 // pred_check
          %p217 = pneg %p216
        $region34: #{dolg_local_branch.2} parent=27 // pred_check_branch
          %219 = sbr.rel (%p217) target = $region36
        $region35: #{dolg_local_branch.2} parent=27 // pred_region
          %vm220 = vcmask 257024
          %221 = vst.msk [vmem:[%s215] sm:$0xf] %vm220, 0.0
        $region36: #{dolg_local_branch.2} parent=27 // pred_fallthru
          _
        %v222 = vld [vmem:[#allocation2] sm:$0xff]
        %v223 = vld [vmem:[#allocation2 + $0x8] sm:$0xff]
        %v224 = vld [vmem:[#allocation2 + $0x10] sm:$0xff]
        %v225 = vld [vmem:[#allocation2 + $0x18] sm:$0xff]
        %v226 = vld [vmem:[#allocation2 + $0x20] sm:$0xff]
        %v227 = vld [vmem:[#allocation2 + $0x28] sm:$0xff]
        %v228 = vld [vmem:[#allocation2 + $0x30] sm:$0xff]
        %v229 = vld [vmem:[#allocation2 + $0x38] sm:$0xff]
        %v230 = vld [vmem:[#allocation2 + $0x40] sm:$0xff]
        %v231 = vld [vmem:[#allocation2 + $0x48] sm:$0xff]
        %v232 = vld [vmem:[#allocation2 + $0x50] sm:$0xff]
        %v233 = vld [vmem:[#allocation2 + $0x58] sm:$0xff]
        %v234 = vld [vmem:[#allocation2 + $0x60] sm:$0xff]
        %v235 = vld [vmem:[#allocation2 + $0x68] sm:$0xff]
        %v236 = vld [vmem:[#allocation2 + $0x70] sm:$0xff]
        %v237 = vld [vmem:[#allocation2 + $0x78] sm:$0xff]
        %v238 = vld [vmem:[#allocation2 + $0x80] sm:$0xff]
        %v239 = vld [vmem:[#allocation2 + $0x88] sm:$0xff]
        %v240 = vld [vmem:[#allocation2 + $0x90] sm:$0xff]
        %v241 = vld [vmem:[#allocation2 + $0x98] sm:$0xff]
        %v242 = vld [vmem:[#allocation2 + $0xa0] sm:$0xff]
        %v243 = vld [vmem:[#allocation2 + $0xa8] sm:$0xff]
        %v244 = vld [vmem:[#allocation2 + $0xb0] sm:$0xff]
        %v245 = vld [vmem:[#allocation2 + $0xb8] sm:$0xff]
        %v246 = vld [vmem:[#allocation2 + $0xc0] sm:$0xff]
        %v247 = vld [vmem:[#allocation2 + $0xc8] sm:$0xff]
        %v248 = vld [vmem:[#allocation2 + $0xd0] sm:$0xff]
        %v249 = vld [vmem:[#allocation2 + $0xd8] sm:$0xff]
        %v250 = vld [vmem:[#allocation2 + $0xe0] sm:$0xff]
        %v251 = vld [vmem:[#allocation2 + $0xe8] sm:$0xff]
        %v252 = vld [vmem:[#allocation2 + $0xf0] sm:$0xff]
        %v253 = vld [vmem:[#allocation2 + $0xf8] sm:$0xff]
        %v254 = vld [vmem:[%s215] sm:$0xf]
        %v255 = vld [vmem:[%s207] sm:$0xff]
        %257 = vst [vmem:[#allocation1] ss:$2 sm:$0xff] %v255
        %v258 = vld.sshfl [vmem:[#allocation1] sm:$0xff pattern:$0x75316420]
        %v259 = vld.sshfl [vmem:[#allocation1 + $0x8] sm:$0xff pattern:$0x75316420]
        %262 = vmatpush.msra.mxu0 %v237
        %263 = vmatpush.msra.mxu0 %v236
        %264 = vmatpush.msra.mxu0 %v235
        %265 = vmatpush.msra.mxu0 %v234
        %266 = vmatpush.msra.mxu0 %v233
        %267 = vmatpush.msra.mxu0 %v232
        %268 = vmatpush.msra.mxu0 %v231
        %269 = vmatpush.msra.mxu0 %v230
        %270 = vmatpush.msra.mxu0 %v229
        %271 = vmatpush.msra.mxu0 %v228
        %272 = vmatpush.msra.mxu0 %v227
        %273 = vmatpush.msra.mxu0 %v226
        %274 = vmatpush.msra.mxu0 %v225
        %275 = vmatpush.msra.mxu0 %v224
        %276 = vmatpush.msra.mxu0 %v223
        %277 = vmatpush.msra.mxu0 %v222
        %278 = vmatmul.f32.gmra.mxu0 %v258
        %v279 = vpop.f32.mrf.mxu0
        %v280 = vadd.f32 0.0, %v279
        %281 = vdwg.mxu0
        %282 = vmatpush.msra.mxu0 %v253
        %283 = vmatpush.msra.mxu0 %v252
        %284 = vmatpush.msra.mxu0 %v251
        %285 = vmatpush.msra.mxu0 %v250
        %286 = vmatpush.msra.mxu0 %v249
        %287 = vmatpush.msra.mxu0 %v248
        %288 = vmatpush.msra.mxu0 %v247
        %289 = vmatpush.msra.mxu0 %v246
        %290 = vmatpush.msra.mxu0 %v245
        %291 = vmatpush.msra.mxu0 %v244
        %292 = vmatpush.msra.mxu0 %v243
        %293 = vmatpush.msra.mxu0 %v242
        %294 = vmatpush.msra.mxu0 %v241
        %295 = vmatpush.msra.mxu0 %v240
        %296 = vmatpush.msra.mxu0 %v239
        %297 = vmatpush.msra.mxu0 %v238
        %298 = vmatmul.f32.gmra.mxu0 %v259
        %v299 = vpop.f32.mrf.mxu0
        %v300 = vadd.f32 %v280, %v299
        %301 = vdwg.mxu0
        %v302 = vadd.f32 %v254, %v300
        %vm303 = vcmask 257024
        %304 = vst.msk [vmem:[%s215] sm:$0xf] %vm303, %v302
        %p305 = scmp.lt.s32.totalorder %s19, 1
        %s306 = scalar_select %p305, %s19, 1
        %p307 = scmp.lt.s32.totalorder %s20, 0
        %s308 = scalar_select %p307, %s20, 0
        %s309 = sadd.s32 %s308, %s306
        %s310 = smul.addr %s309, 4
        %s311 = scalar_lea.vmem %s2, %s310
        // Predicated region
        $region37: #{dolg_local_branch.2} parent=27 // pred_check
          %p312 = pneg %p104
        $region38: #{dolg_local_branch.2} parent=27 // pred_check_branch
          %314 = sbr.rel (%p312) target = $region40
        $region39: #{dolg_local_branch.2} parent=27 // pred_region
          _
        $region40: #{dolg_local_branch.2} parent=27 // pred_fallthru
          _
      $region28: #{dolg_local_branch.2} parent=5 // pred_fallthru
        _
      %p315 = scmp.le.s32.totalorder 2, %s9
      // Predicated region
      $region41: #{dolg_local_branch.2} parent=5 // pred_check
        %p316 = pneg %p315
      $region42: #{dolg_local_branch.2} parent=5 // pred_check_branch
        %318 = sbr.rel (%p316) target = $region44
      $region43: #{dolg_local_branch.2} parent=5 // pred_region
        %s319 = ssub.s32 %s9, 2
        // Predicated region
        $region45: #{dolg_local_branch.2} parent=43 // pred_check
          %p320 = pneg %p110
        $region46: #{dolg_local_branch.2} parent=43 // pred_check_branch
          %322 = sbr.rel (%p320) target = $region48
        $region47: #{dolg_local_branch.2} parent=43 // pred_region
          %p323 = scmp.lt.s32.totalorder %s22, 1
          %s324 = scalar_select %p323, %s22, 1
          %p325 = scmp.lt.s32.totalorder %s23, 0
          %s326 = scalar_select %p325, %s23, 0
          %s327 = sadd.s32 %s326, %s324
          %s328 = smul.addr %s327, 4
          %s329 = scalar_lea.vmem %s2, %s328
        $region48: #{dolg_local_branch.2} parent=43 // pred_fallthru
          _
      $region44: #{dolg_local_branch.2} parent=5 // pred_fallthru
        _
    $region6: #{dolg_local_branch.2} parent=1 // loop_footer
      %s13 = sadd.s32 1, %s9
    $region7: #{dolg_local_branch.2} parent=1 // loop_footer_branch
      %8 = sbr.rel target = $region3
    $region8: #{dolg_local_branch.2} parent=1 // loop_exit
      _
    %330 = vsyncpa [#allocation3], 1
    %s331 = scalar_lea.sflag [#allocation3], 1
    %332 = vsyncpa %s331, 1

// kernel: dolg_local_branch.3
$region0: #{dolg_local_branch.3}
  #allocation0 [shape = 'u32[]', space=smem, size = 0x4, offset = 0x4, fixed_abs, tag = 'smem constant byte address 0x4 - core index']
  #allocation1 [shape = 'u32[72,128]{1,0:T(1,128)}', space=vmem, size = 0x9000, scoped, tag = 'internal scratch']
  #allocation2 [shape = 'f32[3,2,8]{2,1,0:T(2,128)}', space=vmem, size = 0xc00, scoped, tag = 'scratch operand']
  %s0 = inlined_call_operand.vmem [shape: f32[3,2,36], index: 0, kind: input, shape index: {}]
  %s1 = inlined_call_operand.vmem [shape: f32[3,36,8], index: 1, kind: input, shape index: {}]
  %s2 = inlined_call_operand.vmem [shape: f32[3,8], index: 2, kind: input, shape index: {}]
  %s3 = inlined_call_operand.vmem [shape: f32[8,16], index: 3, kind: input, shape index: {}]
  %s4 = inlined_call_operand.vmem [shape: f32[1,16], index: 4, kind: input, shape index: {}]
  %s5 = inlined_call_operand.vmem [shape: f32[48,16], index: 5, kind: input, shape index: {}]
  %s6 = inlined_call_operand.vmem [shape: f32[1,16], index: 6, kind: input, shape index: {}]
  %s7 = inlined_call_operand.vmem [shape: f32[16,16], index: 7, kind: input, shape index: {}]
  %s8 = inlined_call_operand.vmem [shape: f32[1,16], index: 8, kind: input, shape index: {}]
  %s9 = inlined_call_operand.vmem [shape: f32[1,16], index: 9, kind: input, shape index: {}]
  %s10 = inlined_call_operand.vmem [shape: f32[16,16], index: 10, kind: input, shape index: {}]
  %s11 = inlined_call_operand.vmem [shape: f32[1,16], index: 11, kind: input, shape index: {}]
  %s12 = inlined_call_operand.vmem [shape: f32[2,16,64], index: 12, kind: output, shape index: {}]
  %s13 = sld [smem:[#allocation0]]
  $region66: #{dolg_local_branch.3} parent=0
    _
  %s15 = ssub.s32 1, %s13
  %s16 = scalar_select 0, %s15, %s13
  // Predicated region
  $region2: #{dolg_local_branch.3} parent=0 // pred_check
    _
  $region3: #{dolg_local_branch.3} parent=0 // pred_check_branch
    %18 = sbr.rel (0) target = $region5
  $region4: #{dolg_local_branch.3} parent=0 // pred_region
    _
  $region5: #{dolg_local_branch.3} parent=0 // pred_fallthru
    _
  // Predicated region
  $region6: #{dolg_local_branch.3} parent=0 // pred_check
    _
  $region7: #{dolg_local_branch.3} parent=0 // pred_check_branch
    %20 = sbr.rel (0) target = $region9
  $region8: #{dolg_local_branch.3} parent=0 // pred_region
    _
  $region9: #{dolg_local_branch.3} parent=0 // pred_fallthru
    _
  // Predicated region
  $region10: #{dolg_local_branch.3} parent=0 // pred_check
    _
  $region11: #{dolg_local_branch.3} parent=0 // pred_check_branch
    %22 = sbr.rel (0) target = $region13
  $region12: #{dolg_local_branch.3} parent=0 // pred_region
    _
  $region13: #{dolg_local_branch.3} parent=0 // pred_fallthru
    _
  // Predicated region
  $region14: #{dolg_local_branch.3} parent=0 // pred_check
    _
  $region15: #{dolg_local_branch.3} parent=0 // pred_check_branch
    %24 = sbr.rel (0) target = $region17
  $region16: #{dolg_local_branch.3} parent=0 // pred_region
    _
  $region17: #{dolg_local_branch.3} parent=0 // pred_fallthru
    _
  // Predicated region
  $region18: #{dolg_local_branch.3} parent=0 // pred_check
    _
  $region19: #{dolg_local_branch.3} parent=0 // pred_check_branch
    %26 = sbr.rel (0) target = $region21
  $region20: #{dolg_local_branch.3} parent=0 // pred_region
    _
  $region21: #{dolg_local_branch.3} parent=0 // pred_fallthru
    _
  // Predicated region
  $region22: #{dolg_local_branch.3} parent=0 // pred_check
    _
  $region23: #{dolg_local_branch.3} parent=0 // pred_check_branch
    %28 = sbr.rel (0) target = $region25
  $region24: #{dolg_local_branch.3} parent=0 // pred_region
    _
  $region25: #{dolg_local_branch.3} parent=0 // pred_fallthru
    _
  // Predicated region
  $region26: #{dolg_local_branch.3} parent=0 // pred_check
    _
  $region27: #{dolg_local_branch.3} parent=0 // pred_check_branch
    %30 = sbr.rel (0) target = $region29
  $region28: #{dolg_local_branch.3} parent=0 // pred_region
    _
  $region29: #{dolg_local_branch.3} parent=0 // pred_fallthru
    _
  // Predicated region
  $region30: #{dolg_local_branch.3} parent=0 // pred_check
    _
  $region31: #{dolg_local_branch.3} parent=0 // pred_check_branch
    %32 = sbr.rel (0) target = $region33
  $region32: #{dolg_local_branch.3} parent=0 // pred_region
    _
  $region33: #{dolg_local_branch.3} parent=0 // pred_fallthru
    _
  // Predicated region
  $region34: #{dolg_local_branch.3} parent=0 // pred_check
    _
  $region35: #{dolg_local_branch.3} parent=0 // pred_check_branch
    %34 = sbr.rel (0) target = $region37
  $region36: #{dolg_local_branch.3} parent=0 // pred_region
    _
  $region37: #{dolg_local_branch.3} parent=0 // pred_fallthru
    _
  // Predicated region
  $region38: #{dolg_local_branch.3} parent=0 // pred_check
    _
  $region39: #{dolg_local_branch.3} parent=0 // pred_check_branch
    %36 = sbr.rel (0) target = $region41
  $region40: #{dolg_local_branch.3} parent=0 // pred_region
    _
  $region41: #{dolg_local_branch.3} parent=0 // pred_fallthru
    _
  // Predicated region
  $region42: #{dolg_local_branch.3} parent=0 // pred_check
    _
  $region43: #{dolg_local_branch.3} parent=0 // pred_check_branch
    %38 = sbr.rel (0) target = $region45
  $region44: #{dolg_local_branch.3} parent=0 // pred_region
    _
  $region45: #{dolg_local_branch.3} parent=0 // pred_fallthru
    _
  // Predicated region
  $region46: #{dolg_local_branch.3} parent=0 // pred_check
    _
  $region47: #{dolg_local_branch.3} parent=0 // pred_check_branch
    %40 = sbr.rel (0) target = $region49
  $region48: #{dolg_local_branch.3} parent=0 // pred_region
    _
  $region49: #{dolg_local_branch.3} parent=0 // pred_fallthru
    _
  %p41 = scmp.eq.s32.totalorder 0, 0
  // Predicated region
  $region50: #{dolg_local_branch.3} parent=0 // pred_check
    %p42 = pneg %p41
  $region51: #{dolg_local_branch.3} parent=0 // pred_check_branch
    %44 = sbr.rel (%p42) target = $region53
  $region52: #{dolg_local_branch.3} parent=0 // pred_region
    %vm45 = vcmask 58368
    %46 = vst.msk [vmem:[#allocation2] sm:$0x3] %vm45, 0.0
    %47 = vst.msk [vmem:[#allocation2 + $0x2] sm:$0x3] %vm45, 0.0
    %48 = vst.msk [vmem:[#allocation2 + $0x4] sm:$0x3] %vm45, 0.0
  $region53: #{dolg_local_branch.3} parent=0 // pred_fallthru
    _
  %v49 = vld [vmem:[#allocation2] sm:$0x3]
  %v50 = vld [vmem:[%s0] sm:$0x3]
  %v51 = vld [vmem:[%s1] sm:$0xff]
  %v52 = vld [vmem:[%s1 + $0x8] sm:$0xff]
  %v53 = vld [vmem:[%s1 + $0x10] sm:$0xff]
  %v54 = vld [vmem:[%s1 + $0x18] sm:$0xff]
  %v55 = vld [vmem:[%s1 + $0x20] sm:$0xf]
  %vm56 = vcmask 293888
  %v58 = vsel %vm56, %v50, 0
  %vm60 = vcmask 1043456
  %v62 = vsel %vm60, %v55, 0
  %64 = vmatpush.msra.mxu0 0.0
  %65 = vmatpush.msra.mxu0 0.0
  %66 = vmatpush.msra.mxu0 0.0
  %67 = vmatpush.msra.mxu0 0.0
  %68 = vmatpush.msra.mxu0 0.0
  %69 = vmatpush.msra.mxu0 0.0
  %70 = vmatpush.msra.mxu0 0.0
  %71 = vmatpush.msra.mxu0 0.0
  %72 = vmatpush.msra.mxu0 0.0
  %73 = vmatpush.msra.mxu0 0.0
  %74 = vmatpush.msra.mxu0 0.0
  %75 = vmatpush.msra.mxu0 %v62
  %76 = vmatpush.msra.mxu0 %v54
  %77 = vmatpush.msra.mxu0 %v53
  %78 = vmatpush.msra.mxu0 %v52
  %79 = vmatpush.msra.mxu0 %v51
  %80 = vmatmul.f32.gmra.mxu0 %v58
  %v81 = vpop.f32.mrf.mxu0
  %v82 = vadd.f32 0.0, %v81
  %83 = vdwg.mxu0
  %v84 = vadd.f32 %v49, %v82
  %vm85 = vcmask 58368
  %86 = vst.msk [vmem:[#allocation2] sm:$0x3] %vm85, %v84
  %s87 = scalar_lea.vmem [#allocation2], 2
  %v88 = vld [vmem:[%s87] sm:$0x3]
  %s89 = scalar_lea.vmem %s0, 2
  %v90 = vld [vmem:[%s89] sm:$0x3]
  %s91 = scalar_lea.vmem %s1, 40
  %v92 = vld [vmem:[%s91] sm:$0xff]
  %v93 = vld [vmem:[%s91 + $0x8] sm:$0xff]
  %v94 = vld [vmem:[%s91 + $0x10] sm:$0xff]
  %v95 = vld [vmem:[%s91 + $0x18] sm:$0xff]
  %v96 = vld [vmem:[%s91 + $0x20] sm:$0xf]
  %v98 = vsel %vm56, %v90, 0
  %v101 = vsel %vm60, %v96, 0
  %103 = vmatpush.msra.mxu0 0.0
  %104 = vmatpush.msra.mxu0 0.0
  %105 = vmatpush.msra.mxu0 0.0
  %106 = vmatpush.msra.mxu0 0.0
  %107 = vmatpush.msra.mxu0 0.0
  %108 = vmatpush.msra.mxu0 0.0
  %109 = vmatpush.msra.mxu0 0.0
  %110 = vmatpush.msra.mxu0 0.0
  %111 = vmatpush.msra.mxu0 0.0
  %112 = vmatpush.msra.mxu0 0.0
  %113 = vmatpush.msra.mxu0 0.0
  %114 = vmatpush.msra.mxu0 %v101
  %115 = vmatpush.msra.mxu0 %v95
  %116 = vmatpush.msra.mxu0 %v94
  %117 = vmatpush.msra.mxu0 %v93
  %118 = vmatpush.msra.mxu0 %v92
  %119 = vmatmul.f32.gmra.mxu0 %v98
  %v120 = vpop.f32.mrf.mxu0
  %v121 = vadd.f32 0.0, %v120
  %122 = vdwg.mxu0
  %v123 = vadd.f32 %v88, %v121
  %124 = vst.msk [vmem:[%s87] sm:$0x3] %vm85, %v123
  %s125 = scalar_lea.vmem [#allocation2], 4
  %v126 = vld [vmem:[%s125] sm:$0x3]
  %s127 = scalar_lea.vmem %s0, 4
  %v128 = vld [vmem:[%s127] sm:$0x3]
  %s129 = scalar_lea.vmem %s1, 80
  %v130 = vld [vmem:[%s129] sm:$0xff]
  %v131 = vld [vmem:[%s129 + $0x8] sm:$0xff]
  %v132 = vld [vmem:[%s129 + $0x10] sm:$0xff]
  %v133 = vld [vmem:[%s129 + $0x18] sm:$0xff]
  %v134 = vld [vmem:[%s129 + $0x20] sm:$0xf]
  %v136 = vsel %vm56, %v128, 0
  %v139 = vsel %vm60, %v134, 0
  %141 = vmatpush.msra.mxu0 0.0
  %142 = vmatpush.msra.mxu0 0.0
  %143 = vmatpush.msra.mxu0 0.0
  %144 = vmatpush.msra.mxu0 0.0
  %145 = vmatpush.msra.mxu0 0.0
  %146 = vmatpush.msra.mxu0 0.0
  %147 = vmatpush.msra.mxu0 0.0
  %148 = vmatpush.msra.mxu0 0.0
  %149 = vmatpush.msra.mxu0 0.0
  %150 = vmatpush.msra.mxu0 0.0
  %151 = vmatpush.msra.mxu0 0.0
  %152 = vmatpush.msra.mxu0 %v139
  %153 = vmatpush.msra.mxu0 %v133
  %154 = vmatpush.msra.mxu0 %v132
  %155 = vmatpush.msra.mxu0 %v131
  %156 = vmatpush.msra.mxu0 %v130
  %157 = vmatmul.f32.gmra.mxu0 %v136
  %v158 = vpop.f32.mrf.mxu0
  %v159 = vadd.f32 0.0, %v158
  %160 = vdwg.mxu0
  %v161 = vadd.f32 %v126, %v159
  %162 = vst.msk [vmem:[%s125] sm:$0x3] %vm85, %v161
  // Predicated region
  $region54: #{dolg_local_branch.3} parent=0 // pred_check
    %p163 = pneg %p41
  $region55: #{dolg_local_branch.3} parent=0 // pred_check_branch
    %165 = sbr.rel (%p163) target = $region57
  $region56: #{dolg_local_branch.3} parent=0 // pred_region
    %v166 = vld [vmem:[#allocation2] sm:$0x3]
    %v167 = vld [vmem:[%s2] sm:$0x1]
    %v168 = vperm.slane %v167, 0
    %v169 = vadd.f32 %v166, %v168
    %v170 = vld [vmem:[%s3] sm:$0xff]
    %v171 = vld [vmem:[%s4] sm:$0x1]
    %v173 = vperm.slane %v171, 0
    %vm175 = vcmask 64512
    %v177 = vsel %vm175, %v169, 0
    %179 = vmatpush.msra.mxu0 0.0
    %180 = vmatpush.msra.mxu0 0.0
    %181 = vmatpush.msra.mxu0 0.0
    %182 = vmatpush.msra.mxu0 0.0
    %183 = vmatpush.msra.mxu0 0.0
    %184 = vmatpush.msra.mxu0 0.0
    %185 = vmatpush.msra.mxu0 0.0
    %186 = vmatpush.msra.mxu0 0.0
    %187 = vmatpush.msra.mxu0 0.0
    %188 = vmatpush.msra.mxu0 0.0
    %189 = vmatpush.msra.mxu0 0.0
    %190 = vmatpush.msra.mxu0 0.0
    %191 = vmatpush.msra.mxu0 0.0
    %192 = vmatpush.msra.mxu0 0.0
    %193 = vmatpush.msra.mxu0 0.0
    %194 = vmatpush.msra.mxu0 %v170
    %195 = vmatmul.f32.gmra.mxu0 %v177
    %v196 = vpop.f32.mrf.mxu0
    %v197 = vadd.f32 %v173, %v196
    %198 = vdwg.mxu0
    %v199 = vmax.f32 %v197, 0.0
    %v200 = vld [vmem:[%s87] sm:$0x3]
    %v201 = vld [vmem:[%s2 + $0x1] sm:$0x1]
    %v202 = vperm.slane %v201, 0
    %v203 = vadd.f32 %v200, %v202
    %v205 = vsel %vm175, %v203, 0
    %207 = vmatpush.msra.mxu0 0.0
    %208 = vmatpush.msra.mxu0 0.0
    %209 = vmatpush.msra.mxu0 0.0
    %210 = vmatpush.msra.mxu0 0.0
    %211 = vmatpush.msra.mxu0 0.0
    %212 = vmatpush.msra.mxu0 0.0
    %213 = vmatpush.msra.mxu0 0.0
    %214 = vmatpush.msra.mxu0 0.0
    %215 = vmatpush.msra.mxu0 0.0
    %216 = vmatpush.msra.mxu0 0.0
    %217 = vmatpush.msra.mxu0 0.0
    %218 = vmatpush.msra.mxu0 0.0
    %219 = vmatpush.msra.mxu0 0.0
    %220 = vmatpush.msra.mxu0 0.0
    %221 = vmatpush.msra.mxu0 0.0
    %222 = vmatpush.msra.mxu0 %v170
    %223 = vmatmul.f32.gmra.mxu0 %v205
    %v224 = vpop.f32.mrf.mxu0
    %v225 = vadd.f32 %v173, %v224
    %226 = vdwg.mxu0
    %v227 = vmax.f32 %v225, 0.0
    %v228 = vld [vmem:[%s125] sm:$0x3]
    %v229 = vld [vmem:[%s2 + $0x2] sm:$0x1]
    %v230 = vperm.slane %v229, 0
    %v231 = vadd.f32 %v228, %v230
    %v233 = vsel %vm175, %v231, 0
    %235 = vmatpush.msra.mxu0 0.0
    %236 = vmatpush.msra.mxu0 0.0
    %237 = vmatpush.msra.mxu0 0.0
    %238 = vmatpush.msra.mxu0 0.0
    %239 = vmatpush.msra.mxu0 0.0
    %240 = vmatpush.msra.mxu0 0.0
    %241 = vmatpush.msra.mxu0 0.0
    %242 = vmatpush.msra.mxu0 0.0
    %243 = vmatpush.msra.mxu0 0.0
    %244 = vmatpush.msra.mxu0 0.0
    %245 = vmatpush.msra.mxu0 0.0
    %246 = vmatpush.msra.mxu0 0.0
    %247 = vmatpush.msra.mxu0 0.0
    %248 = vmatpush.msra.mxu0 0.0
    %249 = vmatpush.msra.mxu0 0.0
    %250 = vmatpush.msra.mxu0 %v170
    %251 = vmatmul.f32.gmra.mxu0 %v233
    %v252 = vpop.f32.mrf.mxu0
    %v253 = vadd.f32 %v173, %v252
    %254 = vdwg.mxu0
    %v255 = vmax.f32 %v253, 0.0
    %257 = vrot.lane.b32.xlu0 %v227, 16
    %v258 = vpop.permute.xlu0 %257
    %261 = vrot.lane.b32.xlu0 %v255, 32
    %v262 = vpop.permute.xlu0 %261
    %vm264 = vcmask 130048
    %v265 = vsel %vm264, %v199, %v258
    %vm266 = vcmask 261120
    %v267 = vsel %vm266, %v265, %v262
    %v268 = vld [vmem:[%s5] sm:$0xff]
    %v269 = vld [vmem:[%s5 + $0x8] sm:$0xff]
    %v270 = vld [vmem:[%s5 + $0x10] sm:$0xff]
    %v271 = vld [vmem:[%s5 + $0x18] sm:$0xff]
    %v272 = vld [vmem:[%s5 + $0x20] sm:$0xff]
    %v273 = vld [vmem:[%s5 + $0x28] sm:$0xff]
    %v274 = vld [vmem:[%s6] sm:$0x1]
    %v276 = vperm.slane %v274, 0
    %vm278 = vcmask 392192
    %v280 = vsel %vm278, %v267, 0
    %282 = vmatpush.msra.mxu0 0.0
    %283 = vmatpush.msra.mxu0 0.0
    %284 = vmatpush.msra.mxu0 0.0
    %285 = vmatpush.msra.mxu0 0.0
    %286 = vmatpush.msra.mxu0 0.0
    %287 = vmatpush.msra.mxu0 0.0
    %288 = vmatpush.msra.mxu0 0.0
    %289 = vmatpush.msra.mxu0 0.0
    %290 = vmatpush.msra.mxu0 0.0
    %291 = vmatpush.msra.mxu0 0.0
    %292 = vmatpush.msra.mxu0 %v273
    %293 = vmatpush.msra.mxu0 %v272
    %294 = vmatpush.msra.mxu0 %v271
    %295 = vmatpush.msra.mxu0 %v270
    %296 = vmatpush.msra.mxu0 %v269
    %297 = vmatpush.msra.mxu0 %v268
    %298 = vmatmul.f32.gmra.mxu0 %v280
    %v299 = vpop.f32.mrf.mxu0
    %v300 = vadd.f32 %v276, %v299
    %301 = vdwg.mxu0
    %v302 = vmax.f32 %v300, 0.0
    %v303 = vld [vmem:[%s7] sm:$0xff]
    %v304 = vld [vmem:[%s7 + $0x8] sm:$0xff]
    %v306 = vsel %vm264, %v302, 0
    %308 = vmatpush.msra.mxu0 0.0
    %309 = vmatpush.msra.mxu0 0.0
    %310 = vmatpush.msra.mxu0 0.0
    %311 = vmatpush.msra.mxu0 0.0
    %312 = vmatpush.msra.mxu0 0.0
    %313 = vmatpush.msra.mxu0 0.0
    %314 = vmatpush.msra.mxu0 0.0
    %315 = vmatpush.msra.mxu0 0.0
    %316 = vmatpush.msra.mxu0 0.0
    %317 = vmatpush.msra.mxu0 0.0
    %318 = vmatpush.msra.mxu0 0.0
    %319 = vmatpush.msra.mxu0 0.0
    %320 = vmatpush.msra.mxu0 0.0
    %321 = vmatpush.msra.mxu0 0.0
    %322 = vmatpush.msra.mxu0 %v304
    %323 = vmatpush.msra.mxu0 %v303
    %324 = vmatmul.f32.gmra.mxu0 %v306
    %v325 = vpop.f32.mrf.mxu0
    %v326 = vadd.f32 0.0, %v325
    %327 = vdwg.mxu0
    %vm328 = vcmask 123904
    %v329 = vsel %vm328, %v326, 0.0
    %v330 = vrot.slane %v329, 4
    %v331 = vadd.f32 %v329, %v330
    %v332 = vrot.slane %v331, 2
    %v333 = vadd.f32 %v331, %v332
    %v334 = vrot.slane %v333, 1
    %v335 = vadd.f32 %v333, %v334
    %v336 = vrcp.pop 2.0
    %v337 = vmul.f32 2.0, %v336
    %v338 = vsub.f32 1.0, %v337
    %v339 = vmul.f32 %v336, %v338
    %v340 = vadd.f32 %v336, %v339
    %vm341 = vweird.f32 %v336
    %v342 = vsel %vm341, %v336, %v340
    %v343 = vmul.f32 %v335, %v342
    %v344 = vsub.f32 %v326, %v343
    %v345 = vmul.f32 %v344, %v344
    %v346 = vsel %vm328, %v345, 0.0
    %v347 = vrot.slane %v346, 4
    %v348 = vadd.f32 %v346, %v347
    %v349 = vrot.slane %v348, 2
    %v350 = vadd.f32 %v348, %v349
    %v351 = vrot.slane %v350, 1
    %v352 = vadd.f32 %v350, %v351
    %v353 = vmul.f32 %v352, %v342
    %v354 = vadd.f32 %v353, 1e-05
    %v355 = vrsqrt.pop %v354
    %v356 = vmul.f32 %v355, %v354
    %v357 = vmul.f32 %v356, %v355
    %v358 = vmul.f32 0.5, %v357
    %v359 = vsub.f32 1.5, %v358
    %v360 = vmul.f32 %v355, %v359
    %vm361 = vweird.f32 %v354
    %vm362 = vweird.f32 %v355
    %vm363 = vmor %vm361, %vm362
    %v364 = vsel %vm363, %v355, %v360
    %v365 = vmul.f32 %v344, %v364
    %v366 = vld [vmem:[%s8] sm:$0x1]
    %v368 = vperm.slane %v366, 0
    %v370 = vmul.f32 %v365, %v368
    %v371 = vld [vmem:[%s9] sm:$0x1]
    %v373 = vperm.slane %v371, 0
    %v375 = vadd.f32 %v370, %v373
    %v376 = vmax.f32 %v375, 0.0
    %v377 = vld [vmem:[%s10] sm:$0xff]
    %v378 = vld [vmem:[%s10 + $0x8] sm:$0xff]
    %v379 = vld [vmem:[%s11] sm:$0x1]
    %v381 = vperm.slane %v379, 0
    %v384 = vsel %vm264, %v376, 0
    %386 = vmatpush.msra.mxu0 0.0
    %387 = vmatpush.msra.mxu0 0.0
    %388 = vmatpush.msra.mxu0 0.0
    %389 = vmatpush.msra.mxu0 0.0
    %390 = vmatpush.msra.mxu0 0.0
    %391 = vmatpush.msra.mxu0 0.0
    %392 = vmatpush.msra.mxu0 0.0
    %393 = vmatpush.msra.mxu0 0.0
    %394 = vmatpush.msra.mxu0 0.0
    %395 = vmatpush.msra.mxu0 0.0
    %396 = vmatpush.msra.mxu0 0.0
    %397 = vmatpush.msra.mxu0 0.0
    %398 = vmatpush.msra.mxu0 0.0
    %399 = vmatpush.msra.mxu0 0.0
    %400 = vmatpush.msra.mxu0 %v378
    %401 = vmatpush.msra.mxu0 %v377
    %402 = vmatmul.f32.gmra.mxu0 %v384
    %v403 = vpop.f32.mrf.mxu0
    %v404 = vadd.f32 %v381, %v403
    %405 = vdwg.mxu0
    %vm406 = vcmp.gt.f32.partialorder %v404, 20.0
    %v407 = vmin.f32 %v404, 20.0
    %v408 = vmul.f32 %v407, 1.442695
    %v409 = vpow.pop %v408
    %v410 = vadd.f32 %v409, 1.0
    %v411 = vlog2.pop %v410
    %v412 = vmul.f32 %v411, 0.6931472
    %v413 = vmul.f32 -0.5, %v409
    %v414 = vadd.f32 %v413, 1.0
    %v415 = vmul.f32 %v414, %v409
    %v416 = vand.u32 2147483647, %v409
    %vm417 = vcmp.lt.f32.partialorder %v416, 0.0004427343
    %v418 = vsel %vm417, %v415, %v412
    %v419 = vsel %vm406, %v404, %v418
    %v420 = vmul.f32 %v375, %v375
    %v421 = vsel %vm328, %v420, 0.0
    %422 = vadd.xlane.f32.xlu0 %v421
    %v423 = vpop.xlane.xlu0 %422
    %v424 = vmax.f32 %v423, 1e-24
    %v425 = vrsqrt.pop %v424
    %v426 = vmul.f32 %v425, %v424
    %v427 = vmul.f32 %v426, %v425
    %v428 = vmul.f32 0.5, %v427
    %v429 = vsub.f32 1.5, %v428
    %v430 = vmul.f32 %v425, %v429
    %vm431 = vweird.f32 %v424
    %vm432 = vweird.f32 %v425
    %vm433 = vmor %vm431, %vm432
    %v434 = vsel %vm433, %v425, %v430
    %v435 = vmul.f32 %v375, %v434
    %v436 = vmul.f32 %v435, %v419
    %v437 = vperm.slane %v436, 0
    %v438 = vlaneseq
    %v439 = vshrl.u32 %v438, 7
    %441 = vset.pattern.permute.xlu0 %v439
    %442 = vperm.xlu0 %441, %v437
    %v443 = vpop.permute.xlu0 %442
    %v444 = vlaneseq
    %v445 = vshrl.u32 %v444, 7
    %v446 = vadd.s32 %v445, 8
    %447 = vset.pattern.permute.xlu0 %v446
    %448 = vperm.xlu0 %447, %v437
    %v449 = vpop.permute.xlu0 %448
    %v450 = vperm.slane %v436, 1
    %v451 = vlaneseq
    %v452 = vshrl.u32 %v451, 7
    %454 = vset.pattern.permute.xlu0 %v452
    %455 = vperm.xlu0 %454, %v450
    %v456 = vpop.permute.xlu0 %455
    %v457 = vlaneseq
    %v458 = vshrl.u32 %v457, 7
    %v459 = vadd.s32 %v458, 8
    %460 = vset.pattern.permute.xlu0 %v459
    %461 = vperm.xlu0 %460, %v450
    %v462 = vpop.permute.xlu0 %461
    %vm463 = vcmask 523264
    %464 = vst.msk [vmem:[%s12] sm:$0xff] %vm463, %v443
    %465 = vst.msk [vmem:[%s12 + $0x8] sm:$0xff] %vm463, %v449
    %466 = vst.msk [vmem:[%s12 + $0x10] sm:$0xff] %vm463, %v456
    %467 = vst.msk [vmem:[%s12 + $0x18] sm:$0xff] %vm463, %v462
  $region57: #{dolg_local_branch.3} parent=0 // pred_fallthru
    _
  // Predicated region
  $region58: #{dolg_local_branch.3} parent=0 // pred_check
    _
  $region59: #{dolg_local_branch.3} parent=0 // pred_check_branch
    %469 = sbr.rel (0) target = $region61
  $region60: #{dolg_local_branch.3} parent=0 // pred_region
    _
  $region61: #{dolg_local_branch.3} parent=0 // pred_fallthru
    _
  // Predicated region
  $region62: #{dolg_local_branch.3} parent=0 // pred_check
    _
  $region63: #{dolg_local_branch.3} parent=0 // pred_check_branch
    %471 = sbr.rel (0) target = $region65
  $region64: #{dolg_local_branch.3} parent=0 // pred_region
    _
  $region65: #{dolg_local_branch.3} parent=0 // pred_fallthru
    _

</llo_original>
